<compile_context>
chip_gen: v6e
topology: v6e:2x2x1
jax: 0.10.0
libtpu: 0.0.40
codegen_flags: <defaults>
</compile_context>

<pallas_src>
import numpy as np
import jax
import jax.numpy as jnp
from jax.experimental import pallas as pl
from jax.experimental.pallas import tpu as pltpu

POOL_SIZES = [1, 2, 3, 6]
N_STAGES = len(POOL_SIZES)
ROW_OFFSETS = [int(v) for v in np.cumsum([0] + [ps * ps for ps in POOL_SIZES])]  # [0,1,5,14,50]
PQ_VALID = ROW_OFFSETS[-1]      # 50 valid packed pyramid rows
PQ_PACK = 64                    # padded packed pyramid axis (multiple of 8)
BN_EPS = 1e-5


# ---------------------------------------------------------------------------
# Spatial operator matrices (match AdaptiveAvgPool2d / F.interpolate bilinear
# with align_corners=False).
# ---------------------------------------------------------------------------
def _adaptive_pool_indicator(in_size, out_size):
    """0/1 window-membership matrix and per-output window sizes."""
    m = np.zeros((out_size, in_size), np.float32)
    cnt = np.zeros((out_size,), np.float32)
    for i in range(out_size):
        start = (i * in_size) // out_size
        end = -((-(i + 1) * in_size) // out_size)
        m[i, start:end] = 1.0
        cnt[i] = end - start
    return m, cnt


def _adaptive_pool_matrix(in_size, out_size):
    m01, cnt = _adaptive_pool_indicator(in_size, out_size)
    return m01 / cnt[:, None]


def _bilinear_matrix(in_size, out_size):
    b = np.zeros((out_size, in_size), np.float32)
    scale = in_size / out_size
    for o in range(out_size):
        src = max((o + 0.5) * scale - 0.5, 0.0)
        i0 = min(int(np.floor(src)), in_size - 1)
        i1 = min(i0 + 1, in_size - 1)
        lam = src - i0
        b[o, i0] += 1.0 - lam
        b[o, i1] += lam
    return b


# ---------------------------------------------------------------------------
# Deterministic parameter initialization (shapes implied by the nn.Module).
# ---------------------------------------------------------------------------
def init_params(key, C):
    Cq = C // N_STAGES
    k = jax.random.split(key, 10)
    return dict(
        # per-stage 1x1 conv (bias=False), stored transposed as (C, Cq)
        w_st=jax.random.normal(k[0], (N_STAGES, C, Cq), jnp.float32) * 0.2,
        g_st=0.5 + jax.random.uniform(k[1], (N_STAGES, Cq), jnp.float32),
        b_st=jax.random.normal(k[2], (N_STAGES, Cq), jnp.float32) * 0.1,
        mu_st=jax.random.normal(k[3], (N_STAGES, Cq), jnp.float32) * 0.1,
        var_st=0.5 + jax.random.uniform(k[4], (N_STAGES, Cq), jnp.float32),
        # bottleneck 1x1 conv (bias=False), stored transposed as (2C, C)
        w_b=jax.random.normal(k[5], (2 * C, C), jnp.float32) * 0.2,
        g_b=0.5 + jax.random.uniform(k[6], (C,), jnp.float32),
        b_b=jax.random.normal(k[7], (C,), jnp.float32) * 0.1,
        mu_b=jax.random.normal(k[8], (C,), jnp.float32) * 0.1,
        var_b=0.5 + jax.random.uniform(k[9], (C,), jnp.float32),
    )


# ---------------------------------------------------------------------------
# Operand preparation: fold BN scales into weights, pack stages, cast to bf16.
# ---------------------------------------------------------------------------
def prepare_operands(H, W, C, params):
    Cq = C // N_STAGES
    HW = H * W
    p = params

    # Packed 0/1 pooling-indicator matrix (exact in bf16), per-row f32
    # reciprocal-area scale, and packed bilinear-upsample matrix.
    # Rows/cols [ROW_OFFSETS[s], ROW_OFFSETS[s+1]) belong to stage s; padding
    # rows/cols (PQ_VALID..PQ_PACK) stay exactly zero.
    m_unit = np.zeros((PQ_PACK, HW), np.float32)
    pool_scale = np.zeros((PQ_PACK, 1), np.float32)
    u_all = np.zeros((HW, PQ_PACK), np.float32)
    for s, ps in enumerate(POOL_SIZES):
        lo, hi = ROW_OFFSETS[s], ROW_OFFSETS[s + 1]
        mh, ch = _adaptive_pool_indicator(H, ps)
        mw, cw = _adaptive_pool_indicator(W, ps)
        m_unit[lo:hi, :] = np.kron(mh, mw)
        pool_scale[lo:hi, 0] = 1.0 / np.outer(ch, cw).reshape(-1)
        u_all[:, lo:hi] = np.kron(_bilinear_matrix(ps, H),
                                  _bilinear_matrix(ps, W))

    # Fold eval-mode BatchNorm scale into the 1x1 conv weights (keep bias adds).
    scale_st = p['g_st'] / jnp.sqrt(p['var_st'] + BN_EPS)          # (S, Cq)
    bias_st = p['b_st'] - p['mu_st'] * scale_st                    # (S, Cq)
    w_st_folded = p['w_st'] * scale_st[:, None, :]                 # (S, C, Cq)
    scale_b = p['g_b'] / jnp.sqrt(p['var_b'] + BN_EPS)             # (C,)
    bias_b = p['b_b'] - p['mu_b'] * scale_b                        # (C,)
    w_b_folded = p['w_b'] * scale_b[None, :]                       # (2C, C)

    # All stage convs side by side: (C, S*Cq) == (C, C); stage-major columns.
    w_st_comb = jnp.concatenate([w_st_folded[s] for s in range(N_STAGES)], axis=1)
    bias_st_comb = bias_st.reshape(1, N_STAGES * Cq)

    return dict(
        m_unit=jnp.asarray(m_unit, jnp.bfloat16),        # 0/1 -> exact in bf16
        pool_scale=jnp.asarray(pool_scale, jnp.float32), # (PQ_PACK, 1)
        u_all=jnp.asarray(u_all, jnp.bfloat16),
        w_st_comb=w_st_comb.astype(jnp.bfloat16),
        bias_st_comb=bias_st_comb.astype(jnp.float32),
        wb_id=w_b_folded[:C, :].astype(jnp.bfloat16),
        wb_groups=w_b_folded[C:, :].astype(jnp.bfloat16),
        bias_b=bias_b[None, :].astype(jnp.float32),
    )


# ---------------------------------------------------------------------------
# Pallas kernel.
#   grid = (N, HW // tile_hw)
#   hw==0 step of each batch: compute the tiny packed pyramid result
#   t = (relu(pool(x) @ Wst + b) masked) @ Wbg  -> resident VMEM scratch (bf16)
#   every step: out_tile = relu(x_tile @ Wbid + U_tile @ t + bias_b)  (bf16)
# ---------------------------------------------------------------------------
def _make_ppm_kernel(tile_hw):
    def kernel(x_ref, m_ref, pscale_ref, wst_ref, bst_ref, wbi_ref, wbg_ref,
               bb_ref, u_ref, o_ref, t_ref):
        hw = pl.program_id(1)

        @pl.when(hw == 0)
        def _():
            # ----- phase A: per-batch packed pyramid (tiny, 64 rows) -----
            x_full = x_ref[...].astype(jnp.bfloat16)                   # (HW, C)
            # All 4 adaptive average pools: exact 0/1 sum, exact f32 1/area.
            pooled = jnp.dot(m_ref[...], x_full,
                             preferred_element_type=jnp.float32)       # (64, C)
            pooled = pooled * pscale_ref[...]                          # f32 scale
            # All 4 stage 1x1 convs (BN scale folded) + bias + ReLU at once.
            y = jnp.dot(pooled.astype(jnp.bfloat16), wst_ref[...],
                        preferred_element_type=jnp.float32)            # (64, S*Cq)
            y = jnp.maximum(y + bst_ref[...], 0.0)
            # In-kernel 0/1 group mask: packed row j keeps only the channel
            # group of the stage that owns it; padded rows (>= PQ_VALID) keep
            # nothing (they hold relu(bias) != 0 and must be zeroed).
            cq = y.shape[1] // N_STAGES
            rows = jax.lax.broadcasted_iota(jnp.int32, y.shape, 0)
            cols = jax.lax.broadcasted_iota(jnp.int32, y.shape, 1)
            row_stage = ((rows >= ROW_OFFSETS[1]).astype(jnp.int32)
                         + (rows >= ROW_OFFSETS[2]).astype(jnp.int32)
                         + (rows >= ROW_OFFSETS[3]).astype(jnp.int32))
            col_stage = ((cols >= cq).astype(jnp.int32)
                         + (cols >= 2 * cq).astype(jnp.int32)
                         + (cols >= 3 * cq).astype(jnp.int32))
            keep = jnp.logical_and(row_stage == col_stage, rows < PQ_VALID)
            z = jnp.where(keep, y, 0.0).astype(jnp.bfloat16)
            # Stage-group half of the bottleneck 1x1 conv -> tiny per-batch t.
            t_ref[...] = jnp.dot(z, wbg_ref[...],
                                 preferred_element_type=jnp.float32
                                 ).astype(jnp.bfloat16)                # (64, C)

        # ----- phase B: per-HW-tile identity conv + fused bilinear upsample -----
        start = pl.multiple_of(hw * tile_hw, tile_hw)
        x_tile = x_ref[pl.ds(start, tile_hw), :].astype(jnp.bfloat16)  # (T, C)
        acc = jnp.dot(x_tile, wbi_ref[...],
                      preferred_element_type=jnp.float32)              # (T, C)
        acc = acc + jnp.dot(u_ref[...], t_ref[...],
                            preferred_element_type=jnp.float32)        # upsample
        # Bottleneck BN bias + ReLU; bf16, lane-dense store.
        o_ref[...] = jnp.maximum(acc + bb_ref[...], 0.0).astype(o_ref.dtype)

    return kernel


def pyramid_pooling_forward(x_nhwc, ops, *, tile_hw=None):
    """Core entry point: x in NHWC (any float dtype), returns NHWC bf16."""
    N, H, W, C = x_nhwc.shape
    HW = H * W
    if tile_hw is None:
        tile_hw = HW
        for cand in (1024, 512, 256, 128):
            if HW % cand == 0:
                tile_hw = cand
                break
    assert HW % tile_hw == 0 and (tile_hw % 8 == 0 or tile_hw == HW)
    hw_tiles = HW // tile_hw

    # (N, H, W, C) -> (N, HW, C): pure metadata reshape, no HBM round trip.
    # The kernel casts to bf16 in VMEM, so no external relayout/cast pass either.
    x_flat = x_nhwc.reshape(N, HW, C)

    const_bytes = sum(int(v.size) * v.dtype.itemsize for v in ops.values())
    flops = int(2 * N * (PQ_PACK * HW * C + 2 * PQ_PACK * C * C
                         + HW * C * C + HW * PQ_PACK * C))
    bytes_accessed = int(N * HW * C * x_flat.dtype.itemsize
                         + N * HW * C * 2 + const_bytes)

    const1 = pl.Buffered(1)   # grid-invariant operands: single-buffered
    out_flat = pl.pallas_call(
        _make_ppm_kernel(tile_hw),
        out_shape=jax.ShapeDtypeStruct((N, HW, C), jnp.bfloat16),
        grid_spec=pltpu.PrefetchScalarGridSpec(
            num_scalar_prefetch=0,
            grid=(N, hw_tiles),
            in_specs=[
                # x: full per-batch block; block index constant over hw => one
                # DMA per batch, double-buffered across the batch boundary.
                pl.BlockSpec((None, HW, C), lambda n, hw: (n, 0, 0)),
                pl.BlockSpec((PQ_PACK, HW), lambda n, hw: (0, 0),
                             pipeline_mode=const1),                    # pool 0/1
                pl.BlockSpec((PQ_PACK, 1), lambda n, hw: (0, 0),
                             pipeline_mode=const1),                    # 1/area
                pl.BlockSpec((C, C), lambda n, hw: (0, 0),
                             pipeline_mode=const1),                    # stage convs
                pl.BlockSpec((1, C), lambda n, hw: (0, 0),
                             pipeline_mode=const1),                    # stage bias
                pl.BlockSpec((C, C), lambda n, hw: (0, 0),
                             pipeline_mode=const1),                    # Wb identity
                pl.BlockSpec((C, C), lambda n, hw: (0, 0),
                             pipeline_mode=const1),                    # Wb groups
                pl.BlockSpec((1, C), lambda n, hw: (0, 0),
                             pipeline_mode=const1),                    # bottleneck bias
                pl.BlockSpec((tile_hw, PQ_PACK), lambda n, hw: (hw, 0)),  # U tile
            ],
            out_specs=pl.BlockSpec((None, tile_hw, C), lambda n, hw: (n, hw, 0)),
            scratch_shapes=[pltpu.VMEM((PQ_PACK, C), jnp.bfloat16)],   # t
        ),
        compiler_params=pltpu.CompilerParams(
            # batch axis parallel (megacore); hw axis carries the t scratch.
            dimension_semantics=("parallel", "arbitrary"),
            vmem_limit_bytes=32 * 1024 * 1024,
        ),
        cost_estimate=pl.CostEstimate(flops=flops, transcendentals=0,
                                      bytes_accessed=bytes_accessed),
    )(x_flat, ops['m_unit'], ops['pool_scale'], ops['w_st_comb'],
      ops['bias_st_comb'], ops['wb_id'], ops['wb_groups'], ops['bias_b'],
      ops['u_all'])

    return out_flat.reshape(N, H, W, C)


def pyramid_pooling_forward_nchw(x_nchw, ops, **kw):
    # Drop-in NCHW compatibility shim (matches the PyTorch layout). Prefer the
    # NHWC entry point: each transpose here is a full extra HBM round trip.
    out = pyramid_pooling_forward(jnp.transpose(x_nchw, (0, 2, 3, 1)), ops, **kw)
    return jnp.transpose(out, (0, 3, 1, 2))


# ---------------------------------------------------------------------------
# Plain-JAX references.
#  A) packed: mirrors the kernel math exactly (tight-tolerance lowering check)
#  B) module: full-f32 PyTorch-structured math from the raw params
#     (loose tolerance - absorbs bf16 operand/output quantization + fusion order)
# ---------------------------------------------------------------------------
def packed_reference(x_nhwc, ops):
    N, H, W, C = x_nhwc.shape
    HW = H * W
    Cq = C // N_STAGES
    x = x_nhwc.reshape(N, HW, C).astype(jnp.bfloat16)
    mask = np.zeros((PQ_PACK, C), np.float32)
    for s in range(N_STAGES):
        mask[ROW_OFFSETS[s]:ROW_OFFSETS[s + 1], s * Cq:(s + 1) * Cq] = 1.0
    mask = jnp.asarray(mask)
    outs = []
    for n in range(N):
        xb = x[n]
        pooled = jnp.dot(ops['m_unit'], xb,
                         preferred_element_type=jnp.float32) * ops['pool_scale']
        y = jnp.dot(pooled.astype(jnp.bfloat16), ops['w_st_comb'],
                    preferred_element_type=jnp.float32)
        y = jnp.maximum(y + ops['bias_st_comb'], 0.0)
        z = (y * mask).astype(jnp.bfloat16)
        t = jnp.dot(z, ops['wb_groups'],
                    preferred_element_type=jnp.float32).astype(jnp.bfloat16)
        acc = jnp.dot(xb, ops['wb_id'], preferred_element_type=jnp.float32)
        acc = acc + jnp.dot(ops['u_all'], t, preferred_element_type=jnp.float32)
        outs.append(jnp.maximum(acc + ops['bias_b'], 0.0).astype(jnp.bfloat16))
    return jnp.stack(outs).reshape(N, H, W, C)


def module_reference_f32(x_nhwc, params):
    """Full-precision mirror of the PyTorch module (eval-mode BN)."""
    N, H, W, C = x_nhwc.shape
    HW = H * W
    p = params
    hp = jax.lax.Precision.HIGHEST
    x = x_nhwc.reshape(N, HW, C).astype(jnp.float32)
    feats = [x]
    for s, ps in enumerate(POOL_SIZES):
        pool_m = jnp.asarray(np.kron(_adaptive_pool_matrix(H, ps),
                                     _adaptive_pool_matrix(W, ps)))     # (P, HW)
        up_m = jnp.asarray(np.kron(_bilinear_matrix(ps, H),
                                   _bilinear_matrix(ps, W)))            # (HW, P)
        pooled = jnp.einsum('ph,nhc->npc', pool_m, x, precision=hp)
        y = jnp.einsum('npc,cq->npq', pooled, p['w_st'][s], precision=hp)
        scale = p['g_st'][s] / jnp.sqrt(p['var_st'][s] + BN_EPS)
        y = jnp.maximum((y - p['mu_st'][s]) * scale + p['b_st'][s], 0.0)
        feats.append(jnp.einsum('hp,npq->nhq', up_m, y, precision=hp))
    cat = jnp.concatenate(feats, axis=-1)                               # (N, HW, 2C)
    out = jnp.einsum('nhd,dc->nhc', cat, p['w_b'], precision=hp)
    scale_b = p['g_b'] / jnp.sqrt(p['var_b'] + BN_EPS)
    out = jnp.maximum((out - p['mu_b']) * scale_b + p['b_b'], 0.0)
    return out.reshape(N, H, W, C)


if __name__ == "__main__":
    # in_channels must be divisible by len(pool_sizes); C=128 keeps stores lane-dense.
    N, C, H, W = 2, 128, 16, 16
    key = jax.random.PRNGKey(0)
    kx, kp = jax.random.split(key)

    x_nhwc = jax.random.normal(kx, (N, H, W, C), jnp.float32)
    params = init_params(kp, C)
    ops = prepare_operands(H, W, C, params)

    # tile_hw=128 -> 2 HW tiles per batch so the multi-tile path is exercised.
    out = jax.block_until_ready(pyramid_pooling_forward(x_nhwc, ops, tile_hw=128))
    assert out.shape == (N, H, W, C) and out.dtype == jnp.bfloat16
    out_f32 = np.asarray(out, np.float32)

    # Check A: exact-structure JAX mirror of the kernel math (tight tolerance).
    ref_a = jax.block_until_ready(packed_reference(x_nhwc, ops))
    if not np.allclose(out_f32, np.asarray(ref_a, np.float32), atol=0.05, rtol=0.02):
        raise AssertionError("Pallas kernel mismatch vs packed JAX reference")

    # Check B: full-f32 PyTorch-structured reference built from the raw params.
    # Loose tolerance absorbs bf16 operand/output quantization and the
    # (conv-then-upsample) vs (upsample-then-conv) fusion reordering.
    ref_b = jax.block_until_ready(module_reference_f32(x_nhwc, params))
    if not np.allclose(out_f32, np.asarray(ref_b), atol=0.6, rtol=0.1):
        raise AssertionError("Pallas kernel mismatch vs f32 module reference")

    print("KERNEL_OK")
</pallas_src>

<mosaic_0001>
module attributes {stable_mosaic.version = 11 : i64} {
  func.func @kernel(%arg0: i32, %arg1: i32, %arg2: memref<1x256x128xf32, #tpu.memory_space<vmem>>, %arg3: memref<64x256xbf16, #tpu.memory_space<vmem>>, %arg4: memref<64x1xf32, #tpu.memory_space<vmem>>, %arg5: memref<128x128xbf16, #tpu.memory_space<vmem>>, %arg6: memref<1x128xf32, #tpu.memory_space<vmem>>, %arg7: memref<128x128xbf16, #tpu.memory_space<vmem>>, %arg8: memref<128x128xbf16, #tpu.memory_space<vmem>>, %arg9: memref<1x128xf32, #tpu.memory_space<vmem>>, %arg10: memref<128x64xbf16, #tpu.memory_space<vmem>>, %arg11: memref<1x128x128xbf16, #tpu.memory_space<vmem>>, %arg12: memref<64x128xbf16, #tpu.memory_space<vmem>>) attributes {dimension_semantics = [#tpu.dimension_semantics<parallel>, #tpu.dimension_semantics<arbitrary>], iteration_bounds = array<i64: 2, 2>, scalar_prefetch = 0 : i64, scratch_operands = 1 : i64, tpu.core_type = #tpu.core_type<tc>, window_params = [{transform_indices = @transform_0, window_bounds = array<i64: 1, 256, 128>}, {pipeline_mode = #tpu.pipeline_mode<synchronous>, transform_indices = @transform_1, window_bounds = array<i64: 64, 256>}, {pipeline_mode = #tpu.pipeline_mode<synchronous>, transform_indices = @transform_2, window_bounds = array<i64: 64, 1>}, {pipeline_mode = #tpu.pipeline_mode<synchronous>, transform_indices = @transform_3, window_bounds = array<i64: 128, 128>}, {pipeline_mode = #tpu.pipeline_mode<synchronous>, transform_indices = @transform_4, window_bounds = array<i64: 1, 128>}, {pipeline_mode = #tpu.pipeline_mode<synchronous>, transform_indices = @transform_5, window_bounds = array<i64: 128, 128>}, {pipeline_mode = #tpu.pipeline_mode<synchronous>, transform_indices = @transform_6, window_bounds = array<i64: 128, 128>}, {pipeline_mode = #tpu.pipeline_mode<synchronous>, transform_indices = @transform_7, window_bounds = array<i64: 1, 128>}, {transform_indices = @transform_8, window_bounds = array<i64: 128, 64>}, {transform_indices = @transform_9, window_bounds = array<i64: 1, 128, 128>}]} {
    %c0_i32 = arith.constant 0 : i32
    %0 = arith.cmpi eq, %arg1, %c0_i32 : i32
    %1 = arith.extui %0 : i1 to i32
    %c0_i32_0 = arith.constant 0 : i32
    %2 = arith.cmpi ne, %1, %c0_i32_0 : i32
    scf.if %2 {
      %c0_15 = arith.constant 0 : index
      %c0_16 = arith.constant 0 : index
      %c0_17 = arith.constant 0 : index
      %24 = vector.load %arg2[%c0_15, %c0_16, %c0_17] : memref<1x256x128xf32, #tpu.memory_space<vmem>>, vector<1x256x128xf32>
      %25 = vector.shape_cast %24 : vector<1x256x128xf32> to vector<256x128xf32>
      %26 = arith.truncf %25 : vector<256x128xf32> to vector<256x128xbf16>
      %c0_18 = arith.constant 0 : index
      %c0_19 = arith.constant 0 : index
      %27 = vector.load %arg3[%c0_18, %c0_19] : memref<64x256xbf16, #tpu.memory_space<vmem>>, vector<64x256xbf16>
      %cst_20 = arith.constant dense<0.000000e+00> : vector<64x128xf32>
      %28 = tpu.matmul %27, %26, %cst_20 {dimension_numbers = #tpu.dot_dimension_numbers<[1], [0], [0], [1], [0, 0, 1, 1], [], []>} : vector<64x256xbf16>, vector<256x128xbf16>, vector<64x128xf32> -> vector<64x128xf32>
      %c0_21 = arith.constant 0 : index
      %c0_22 = arith.constant 0 : index
      %29 = vector.load %arg4[%c0_21, %c0_22] : memref<64x1xf32, #tpu.memory_space<vmem>>, vector<64x1xf32>
      %30 = vector.broadcast %29 : vector<64x1xf32> to vector<64x128xf32>
      %31 = arith.mulf %28, %30 : vector<64x128xf32>
      %32 = arith.truncf %31 : vector<64x128xf32> to vector<64x128xbf16>
      %c0_23 = arith.constant 0 : index
      %c0_24 = arith.constant 0 : index
      %33 = vector.load %arg5[%c0_23, %c0_24] : memref<128x128xbf16, #tpu.memory_space<vmem>>, vector<128x128xbf16>
      %cst_25 = arith.constant dense<0.000000e+00> : vector<64x128xf32>
      %34 = tpu.matmul %32, %33, %cst_25 {dimension_numbers = #tpu.dot_dimension_numbers<[1], [0], [0], [1], [0, 0, 1, 1], [], []>} : vector<64x128xbf16>, vector<128x128xbf16>, vector<64x128xf32> -> vector<64x128xf32>
      %c0_26 = arith.constant 0 : index
      %c0_27 = arith.constant 0 : index
      %35 = vector.load %arg6[%c0_26, %c0_27] : memref<1x128xf32, #tpu.memory_space<vmem>>, vector<1x128xf32>
      %36 = vector.broadcast %35 : vector<1x128xf32> to vector<64x128xf32>
      %37 = arith.addf %34, %36 : vector<64x128xf32>
      %cst_28 = arith.constant 0.000000e+00 : f32
      %38 = vector.broadcast %cst_28 : f32 to vector<64x128xf32>
      %39 = arith.maximumf %37, %38 : vector<64x128xf32>
      %40 = tpu.iota {dimensions = array<i32: 0>} : vector<64x128xi32>
      %41 = tpu.iota {dimensions = array<i32: 1>} : vector<64x128xi32>
      %c1_i32 = arith.constant 1 : i32
      %42 = vector.broadcast %c1_i32 : i32 to vector<64x128xi32>
      %43 = arith.cmpi sge, %40, %42 : vector<64x128xi32>
      %44 = arith.extui %43 : vector<64x128xi1> to vector<64x128xi32>
      %c5_i32 = arith.constant 5 : i32
      %45 = vector.broadcast %c5_i32 : i32 to vector<64x128xi32>
      %46 = arith.cmpi sge, %40, %45 : vector<64x128xi32>
      %47 = arith.extui %46 : vector<64x128xi1> to vector<64x128xi32>
      %48 = arith.addi %44, %47 : vector<64x128xi32>
      %c14_i32 = arith.constant 14 : i32
      %49 = vector.broadcast %c14_i32 : i32 to vector<64x128xi32>
      %50 = arith.cmpi sge, %40, %49 : vector<64x128xi32>
      %51 = arith.extui %50 : vector<64x128xi1> to vector<64x128xi32>
      %52 = arith.addi %48, %51 : vector<64x128xi32>
      %c32_i32 = arith.constant 32 : i32
      %53 = vector.broadcast %c32_i32 : i32 to vector<64x128xi32>
      %54 = arith.cmpi sge, %41, %53 : vector<64x128xi32>
      %55 = arith.extui %54 : vector<64x128xi1> to vector<64x128xi32>
      %c64_i32 = arith.constant 64 : i32
      %56 = vector.broadcast %c64_i32 : i32 to vector<64x128xi32>
      %57 = arith.cmpi sge, %41, %56 : vector<64x128xi32>
      %58 = arith.extui %57 : vector<64x128xi1> to vector<64x128xi32>
      %59 = arith.addi %55, %58 : vector<64x128xi32>
      %c96_i32 = arith.constant 96 : i32
      %60 = vector.broadcast %c96_i32 : i32 to vector<64x128xi32>
      %61 = arith.cmpi sge, %41, %60 : vector<64x128xi32>
      %62 = arith.extui %61 : vector<64x128xi1> to vector<64x128xi32>
      %63 = arith.addi %59, %62 : vector<64x128xi32>
      %64 = arith.cmpi eq, %52, %63 : vector<64x128xi32>
      %c50_i32 = arith.constant 50 : i32
      %65 = vector.broadcast %c50_i32 : i32 to vector<64x128xi32>
      %66 = arith.cmpi slt, %40, %65 : vector<64x128xi32>
      %67 = arith.andi %64, %66 : vector<64x128xi1>
      %cst_29 = arith.constant 0.000000e+00 : f32
      %68 = vector.broadcast %cst_29 : f32 to vector<64x128xf32>
      %69 = arith.select %67, %39, %68 : vector<64x128xi1>, vector<64x128xf32>
      %70 = arith.truncf %69 : vector<64x128xf32> to vector<64x128xbf16>
      %c0_30 = arith.constant 0 : index
      %c0_31 = arith.constant 0 : index
      %71 = vector.load %arg8[%c0_30, %c0_31] : memref<128x128xbf16, #tpu.memory_space<vmem>>, vector<128x128xbf16>
      %cst_32 = arith.constant dense<0.000000e+00> : vector<64x128xf32>
      %72 = tpu.matmul %70, %71, %cst_32 {dimension_numbers = #tpu.dot_dimension_numbers<[1], [0], [0], [1], [0, 0, 1, 1], [], []>} : vector<64x128xbf16>, vector<128x128xbf16>, vector<64x128xf32> -> vector<64x128xf32>
      %73 = arith.truncf %72 : vector<64x128xf32> to vector<64x128xbf16>
      %c0_33 = arith.constant 0 : index
      %c0_34 = arith.constant 0 : index
      %74 = vector.load %arg12[%c0_33, %c0_34] : memref<64x128xbf16, #tpu.memory_space<vmem>>, vector<64x128xbf16>
      tpu.vector_store %arg12[%c0_33, %c0_34], %73 {strides = array<i32>} : memref<64x128xbf16, #tpu.memory_space<vmem>>, vector<64x128xbf16>,
    } else {
    }
    %c128_i32 = arith.constant 128 : i32
    %3 = arith.muli %arg1, %c128_i32 : i32
    %4 = tpu.assume_multiple %3, 128 : i32
    %c0 = arith.constant 0 : index
    %5 = arith.index_cast %4 : i32 to index
    %c0_1 = arith.constant 0 : index
    %6 = vector.load %arg2[%c0, %5, %c0_1] : memref<1x256x128xf32, #tpu.memory_space<vmem>>, vector<1x128x128xf32>
    %7 = vector.shape_cast %6 : vector<1x128x128xf32> to vector<128x128xf32>
    %8 = arith.truncf %7 : vector<128x128xf32> to vector<128x128xbf16>
    %c0_2 = arith.constant 0 : index
    %c0_3 = arith.constant 0 : index
    %9 = vector.load %arg7[%c0_2, %c0_3] : memref<128x128xbf16, #tpu.memory_space<vmem>>, vector<128x128xbf16>
    %cst = arith.constant dense<0.000000e+00> : vector<128x128xf32>
    %10 = tpu.matmul %8, %9, %cst {dimension_numbers = #tpu.dot_dimension_numbers<[1], [0], [0], [1], [0, 0, 1, 1], [], []>} : vector<128x128xbf16>, vector<128x128xbf16>, vector<128x128xf32> -> vector<128x128xf32>
    %c0_4 = arith.constant 0 : index
    %c0_5 = arith.constant 0 : index
    %11 = vector.load %arg10[%c0_4, %c0_5] : memref<128x64xbf16, #tpu.memory_space<vmem>>, vector<128x64xbf16>
    %c0_6 = arith.constant 0 : index
    %c0_7 = arith.constant 0 : index
    %12 = vector.load %arg12[%c0_6, %c0_7] : memref<64x128xbf16, #tpu.memory_space<vmem>>, vector<64x128xbf16>
    %cst_8 = arith.constant dense<0.000000e+00> : vector<128x128xf32>
    %13 = tpu.matmul %11, %12, %cst_8 {dimension_numbers = #tpu.dot_dimension_numbers<[1], [0], [0], [1], [0, 0, 1, 1], [], []>} : vector<128x64xbf16>, vector<64x128xbf16>, vector<128x128xf32> -> vector<128x128xf32>
    %14 = arith.addf %10, %13 : vector<128x128xf32>
    %c0_9 = arith.constant 0 : index
    %c0_10 = arith.constant 0 : index
    %15 = vector.load %arg9[%c0_9, %c0_10] : memref<1x128xf32, #tpu.memory_space<vmem>>, vector<1x128xf32>
    %16 = vector.broadcast %15 : vector<1x128xf32> to vector<128x128xf32>
    %17 = arith.addf %14, %16 : vector<128x128xf32>
    %cst_11 = arith.constant 0.000000e+00 : f32
    %18 = vector.broadcast %cst_11 : f32 to vector<128x128xf32>
    %19 = arith.maximumf %17, %18 : vector<128x128xf32>
    %20 = arith.truncf %19 : vector<128x128xf32> to vector<128x128xbf16>
    %c0_12 = arith.constant 0 : index
    %c0_13 = arith.constant 0 : index
    %c0_14 = arith.constant 0 : index
    %21 = vector.load %arg11[%c0_12, %c0_13, %c0_14] : memref<1x128x128xbf16, #tpu.memory_space<vmem>>, vector<1x128x128xbf16>
    %22 = vector.shape_cast %21 : vector<1x128x128xbf16> to vector<128x128xbf16>
    %23 = vector.shape_cast %20 : vector<128x128xbf16> to vector<1x128x128xbf16>
    tpu.vector_store %arg11[%c0_12, %c0_13, %c0_14], %23 {strides = array<i32>} : memref<1x128x128xbf16, #tpu.memory_space<vmem>>, vector<1x128x128xbf16>,
    return
  }
  func.func @transform_0(%arg0: i32, %arg1: i32) -> (i32, i32, i32) {
    %c0_i32 = arith.constant 0 : i32
    %c0_i32_0 = arith.constant 0 : i32
    %c0_i32_1 = arith.constant 0 : i32
    return %arg0, %c0_i32, %c0_i32_0 : i32, i32, i32
  }
  func.func @transform_1(%arg0: i32, %arg1: i32) -> (i32, i32) {
    %c0_i32 = arith.constant 0 : i32
    %c0_i32_0 = arith.constant 0 : i32
    %c0_i32_1 = arith.constant 0 : i32
    return %c0_i32, %c0_i32_0 : i32, i32
  }
  func.func @transform_2(%arg0: i32, %arg1: i32) -> (i32, i32) {
    %c0_i32 = arith.constant 0 : i32
    %c0_i32_0 = arith.constant 0 : i32
    %c0_i32_1 = arith.constant 0 : i32
    return %c0_i32, %c0_i32_0 : i32, i32
  }
  func.func @transform_3(%arg0: i32, %arg1: i32) -> (i32, i32) {
    %c0_i32 = arith.constant 0 : i32
    %c0_i32_0 = arith.constant 0 : i32
    %c0_i32_1 = arith.constant 0 : i32
    return %c0_i32, %c0_i32_0 : i32, i32
  }
  func.func @transform_4(%arg0: i32, %arg1: i32) -> (i32, i32) {
    %c0_i32 = arith.constant 0 : i32
    %c0_i32_0 = arith.constant 0 : i32
    %c0_i32_1 = arith.constant 0 : i32
    return %c0_i32, %c0_i32_0 : i32, i32
  }
  func.func @transform_5(%arg0: i32, %arg1: i32) -> (i32, i32) {
    %c0_i32 = arith.constant 0 : i32
    %c0_i32_0 = arith.constant 0 : i32
    %c0_i32_1 = arith.constant 0 : i32
    return %c0_i32, %c0_i32_0 : i32, i32
  }
  func.func @transform_6(%arg0: i32, %arg1: i32) -> (i32, i32) {
    %c0_i32 = arith.constant 0 : i32
    %c0_i32_0 = arith.constant 0 : i32
    %c0_i32_1 = arith.constant 0 : i32
    return %c0_i32, %c0_i32_0 : i32, i32
  }
  func.func @transform_7(%arg0: i32, %arg1: i32) -> (i32, i32) {
    %c0_i32 = arith.constant 0 : i32
    %c0_i32_0 = arith.constant 0 : i32
    %c0_i32_1 = arith.constant 0 : i32
    return %c0_i32, %c0_i32_0 : i32, i32
  }
  func.func @transform_8(%arg0: i32, %arg1: i32) -> (i32, i32) {
    %c0_i32 = arith.constant 0 : i32
    %c0_i32_0 = arith.constant 0 : i32
    return %arg1, %c0_i32 : i32, i32
  }
  func.func @transform_9(%arg0: i32, %arg1: i32) -> (i32, i32, i32) {
    %c0_i32 = arith.constant 0 : i32
    %c0_i32_0 = arith.constant 0 : i32
    return %arg0, %arg1, %c0_i32 : i32, i32, i32
  }
}

</mosaic_0001>

<llo_original>
// kernel: tpu_custom_call.1
$region0: #{tpu_custom_call.1}
  #allocation0 [shape = 'u32[]', space=smem, size = 0x4, offset = 0x4, fixed_abs, tag = 'smem constant byte address 0x4 - core index']
  #allocation1 [shape = 'u32[144,128]{1,0:T(1,128)}', space=vmem, size = 0x12000, scoped, tag = 'internal scratch']
  #allocation2 [shape = 'bf16[64,128]{1,0:T(8,128)(2,1)}', space=vmem, size = 0x4000, scoped, tag = 'scratch operand']
  %s0 = inlined_call_operand.hbm [shape: f32[2,256,128], index: 0, kind: input, shape index: {}]
  %s1 = inlined_call_operand.vmem [shape: bf16[64,256], index: 1, kind: input, shape index: {}]
  %s2 = inlined_call_operand.vmem [shape: f32[64,1], index: 2, kind: input, shape index: {}]
  %s3 = inlined_call_operand.vmem [shape: bf16[128,128], index: 3, kind: input, shape index: {}]
  %s4 = inlined_call_operand.vmem [shape: f32[1,128], index: 4, kind: input, shape index: {}]
  %s5 = inlined_call_operand.vmem [shape: bf16[128,128], index: 5, kind: input, shape index: {}]
  %s6 = inlined_call_operand.hbm [shape: bf16[128,128], index: 6, kind: input, shape index: {}]
  %s7 = inlined_call_operand.vmem [shape: f32[1,128], index: 7, kind: input, shape index: {}]
  %s8 = inlined_call_operand.vmem [shape: bf16[256,64], index: 8, kind: input, shape index: {}]
  %s9 = inlined_call_operand.hbm [shape: bf16[2,256,128], index: 9, kind: output, shape index: {}]
  %s10 = sld [smem:[#allocation0]]
  $region81: #{tpu_custom_call.1} parent=0
    _
  %s12 = ssub.s32 1, %s10
  %s13 = scalar_select 0, %s12, %s10
  $region1: #{tpu_custom_call.1} parent=0
    #allocation3 [shape = 'u8[262144]{0}', space=vmem, size = 0x40000, scoped, tag = 'input window, operand 0']
    #allocation4 [shape = 's32[2]{0}', space=sflag, size = 0x8, scoped, tag = 'scoped memory for tpu_custom_call.1']
    #allocation5 [shape = 's32[2]{0}', space=sflag, size = 0x8, scoped, tag = 'scoped memory for tpu_custom_call.1']
    #allocation6 [shape = 'u8[32768]{0}', space=vmem, size = 0x8000, scoped, tag = 'input window, operand 6, single buffered']
    #allocation7 [shape = 's32[1]{0}', space=sflag, size = 0x4, scoped, tag = 'scoped memory for tpu_custom_call.1']
    #allocation8 [shape = 'u8[65536]{0}', space=vmem, size = 0x10000, scoped, tag = 'output window, operand 0']
    %14 = vsyncpa [#allocation4], 0
    %s15 = scalar_lea.sflag [#allocation4], 1
    %16 = vsyncpa %s15, 0
    %17 = vsyncpa [#allocation7], 0
    %18 = vsyncpa [#allocation5], 0
    %s19 = scalar_lea.sflag [#allocation5], 1
    %20 = vsyncpa %s19, 0
    loop: start=0, step=1, limit=6
    $region2: #{tpu_custom_call.1} parent=1 // loop_pre_header
      _
    $region3: #{tpu_custom_call.1} parent=1 // loop_header
      %s22 = sphi 0, %s26
      %p23 = scmp.ge.s32.totalorder %s22, 6
      %s29 = sphi 0, %s41
      %s30 = sphi 0, %s37
      %s31 = sphi 0, %s29
      %s32 = sphi 0, %s30
      %s33 = sphi 0, %s31
      %s34 = sphi 0, %s32
      %s44 = sphi 0, %s46
      %s47 = sphi 0, %s44
      %s48 = sphi 0, %s47
      %s64 = sphi 0, %s48
      %s68 = sphi 0, %s68
      %s70 = sphi 0, %s68
      %s71 = sphi 0, %s70
      %s85 = sphi 0, %s71
      %s89 = sphi 0, %s89
      %s91 = sphi 0, %s89
      %s92 = sphi 0, %s91
      %s106 = sphi 0, %s92
      %s110 = sphi 0, %s110
      %s112 = sphi 0, %s110
      %s113 = sphi 0, %s112
      %s127 = sphi 0, %s113
      %s131 = sphi 0, %s131
      %s133 = sphi 0, %s131
      %s134 = sphi 0, %s133
      %s148 = sphi 0, %s134
      %s152 = sphi 0, %s152
      %s154 = sphi 0, %s152
      %s155 = sphi 0, %s154
      %s169 = sphi 0, %s155
      %s173 = sphi 0, %s173
      %s175 = sphi 0, %s173
      %s176 = sphi 0, %s175
      %s190 = sphi 0, %s176
      %s194 = sphi 0, %s194
      %s196 = sphi 0, %s194
      %s197 = sphi 0, %s196
      %s211 = sphi 0, %s197
      %s217 = sphi 0, %s219
      %s220 = sphi 0, %s217
      %s221 = sphi 0, %s220
      %s237 = sphi 0, %s221
      %s245 = sphi 0, %s247
      %s248 = sphi 0, %s245
      %s249 = sphi 0, %s248
      %s265 = sphi 0, %s249
    $region4: #{tpu_custom_call.1} parent=1 // loop_header_branch
      %25 = sbr.rel (%p23) target = $region8
    $region5: #{tpu_custom_call.1} parent=1 // loop_body
      %s27 = ssub.s32 %s22, 1
      %s28 = ssub.s32 %s22, 2
      %s35 = sadd.s32 1, %s30
      %p36 = scmp.ge.s32.totalorder %s35, 2
      %s37 = scalar_select %p36, 0, %s35
      %s38 = sadd.s32 1, %s29
      %s39 = scalar_select %p36, %s38, %s29
      %p40 = scmp.ge.s32.totalorder %s39, 2
      %s41 = scalar_select %p40, 0, %s39
      %s42 = ssub.s32 %s29, %s41
      %p43 = scmp.eq.s32.totalorder %s42, 0
      %s45 = sadd.s32 %s44, 1
      %s46 = scalar_select %p43, %s44, %s45
      %p49 = pneg %p43
      %p50 = scmp.eq.s32.totalorder %s22, 3
      %p51 = por %p49, %p50
      %p52 = scmp.ne.s32.totalorder %s44, %s47
      %p53 = scmp.eq.s32.totalorder %s22, 0
      %p54 = por %p52, %p53
      %p55 = scmp.ne.s32.totalorder %s44, %s47
      %p56 = scmp.eq.s32.totalorder %s27, 3
      %p57 = por %p55, %p56
      %p58 = scmp.ne.s32.totalorder %s47, %s48
      %p59 = scmp.eq.s32.totalorder %s27, 0
      %p60 = por %p58, %p59
      %p61 = scmp.ne.s32.totalorder %s47, %s48
      %p62 = scmp.eq.s32.totalorder %s28, 3
      %p63 = por %p61, %p62
      %p65 = scmp.ne.s32.totalorder %s48, %s64
      %p66 = scmp.eq.s32.totalorder %s28, 0
      %p67 = por %p65, %p66
      %s69 = sadd.s32 %s68, 1
      %p72 = scmp.eq.s32.totalorder %s22, 3
      %p73 = scmp.ne.s32.totalorder %s68, %s70
      %p74 = scmp.eq.s32.totalorder %s22, 0
      %p75 = por %p73, %p74
      %p76 = scmp.ne.s32.totalorder %s68, %s70
      %p77 = scmp.eq.s32.totalorder %s27, 3
      %p78 = por %p76, %p77
      %p79 = scmp.ne.s32.totalorder %s70, %s71
      %p80 = scmp.eq.s32.totalorder %s27, 0
      %p81 = por %p79, %p80
      %p82 = scmp.ne.s32.totalorder %s70, %s71
      %p83 = scmp.eq.s32.totalorder %s28, 3
      %p84 = por %p82, %p83
      %p86 = scmp.ne.s32.totalorder %s71, %s85
      %p87 = scmp.eq.s32.totalorder %s28, 0
      %p88 = por %p86, %p87
      %s90 = sadd.s32 %s89, 1
      %p93 = scmp.eq.s32.totalorder %s22, 3
      %p94 = scmp.ne.s32.totalorder %s89, %s91
      %p95 = scmp.eq.s32.totalorder %s22, 0
      %p96 = por %p94, %p95
      %p97 = scmp.ne.s32.totalorder %s89, %s91
      %p98 = scmp.eq.s32.totalorder %s27, 3
      %p99 = por %p97, %p98
      %p100 = scmp.ne.s32.totalorder %s91, %s92
      %p101 = scmp.eq.s32.totalorder %s27, 0
      %p102 = por %p100, %p101
      %p103 = scmp.ne.s32.totalorder %s91, %s92
      %p104 = scmp.eq.s32.totalorder %s28, 3
      %p105 = por %p103, %p104
      %p107 = scmp.ne.s32.totalorder %s92, %s106
      %p108 = scmp.eq.s32.totalorder %s28, 0
      %p109 = por %p107, %p108
      %s111 = sadd.s32 %s110, 1
      %p114 = scmp.eq.s32.totalorder %s22, 3
      %p115 = scmp.ne.s32.totalorder %s110, %s112
      %p116 = scmp.eq.s32.totalorder %s22, 0
      %p117 = por %p115, %p116
      %p118 = scmp.ne.s32.totalorder %s110, %s112
      %p119 = scmp.eq.s32.totalorder %s27, 3
      %p120 = por %p118, %p119
      %p121 = scmp.ne.s32.totalorder %s112, %s113
      %p122 = scmp.eq.s32.totalorder %s27, 0
      %p123 = por %p121, %p122
      %p124 = scmp.ne.s32.totalorder %s112, %s113
      %p125 = scmp.eq.s32.totalorder %s28, 3
      %p126 = por %p124, %p125
      %p128 = scmp.ne.s32.totalorder %s113, %s127
      %p129 = scmp.eq.s32.totalorder %s28, 0
      %p130 = por %p128, %p129
      %s132 = sadd.s32 %s131, 1
      %p135 = scmp.eq.s32.totalorder %s22, 3
      %p136 = scmp.ne.s32.totalorder %s131, %s133
      %p137 = scmp.eq.s32.totalorder %s22, 0
      %p138 = por %p136, %p137
      %p139 = scmp.ne.s32.totalorder %s131, %s133
      %p140 = scmp.eq.s32.totalorder %s27, 3
      %p141 = por %p139, %p140
      %p142 = scmp.ne.s32.totalorder %s133, %s134
      %p143 = scmp.eq.s32.totalorder %s27, 0
      %p144 = por %p142, %p143
      %p145 = scmp.ne.s32.totalorder %s133, %s134
      %p146 = scmp.eq.s32.totalorder %s28, 3
      %p147 = por %p145, %p146
      %p149 = scmp.ne.s32.totalorder %s134, %s148
      %p150 = scmp.eq.s32.totalorder %s28, 0
      %p151 = por %p149, %p150
      %s153 = sadd.s32 %s152, 1
      %p156 = scmp.eq.s32.totalorder %s22, 3
      %p157 = scmp.ne.s32.totalorder %s152, %s154
      %p158 = scmp.eq.s32.totalorder %s22, 0
      %p159 = por %p157, %p158
      %p160 = scmp.ne.s32.totalorder %s152, %s154
      %p161 = scmp.eq.s32.totalorder %s27, 3
      %p162 = por %p160, %p161
      %p163 = scmp.ne.s32.totalorder %s154, %s155
      %p164 = scmp.eq.s32.totalorder %s27, 0
      %p165 = por %p163, %p164
      %p166 = scmp.ne.s32.totalorder %s154, %s155
      %p167 = scmp.eq.s32.totalorder %s28, 3
      %p168 = por %p166, %p167
      %p170 = scmp.ne.s32.totalorder %s155, %s169
      %p171 = scmp.eq.s32.totalorder %s28, 0
      %p172 = por %p170, %p171
      %s174 = sadd.s32 %s173, 1
      %p177 = scmp.eq.s32.totalorder %s22, 3
      %p178 = scmp.ne.s32.totalorder %s173, %s175
      %p179 = scmp.eq.s32.totalorder %s22, 0
      %p180 = por %p178, %p179
      %p181 = scmp.ne.s32.totalorder %s173, %s175
      %p182 = scmp.eq.s32.totalorder %s27, 3
      %p183 = por %p181, %p182
      %p184 = scmp.ne.s32.totalorder %s175, %s176
      %p185 = scmp.eq.s32.totalorder %s27, 0
      %p186 = por %p184, %p185
      %p187 = scmp.ne.s32.totalorder %s175, %s176
      %p188 = scmp.eq.s32.totalorder %s28, 3
      %p189 = por %p187, %p188
      %p191 = scmp.ne.s32.totalorder %s176, %s190
      %p192 = scmp.eq.s32.totalorder %s28, 0
      %p193 = por %p191, %p192
      %s195 = sadd.s32 %s194, 1
      %p198 = scmp.eq.s32.totalorder %s22, 3
      %p199 = scmp.ne.s32.totalorder %s194, %s196
      %p200 = scmp.eq.s32.totalorder %s22, 0
      %p201 = por %p199, %p200
      %p202 = scmp.ne.s32.totalorder %s194, %s196
      %p203 = scmp.eq.s32.totalorder %s27, 3
      %p204 = por %p202, %p203
      %p205 = scmp.ne.s32.totalorder %s196, %s197
      %p206 = scmp.eq.s32.totalorder %s27, 0
      %p207 = por %p205, %p206
      %p208 = scmp.ne.s32.totalorder %s196, %s197
      %p209 = scmp.eq.s32.totalorder %s28, 3
      %p210 = por %p208, %p209
      %p212 = scmp.ne.s32.totalorder %s197, %s211
      %p213 = scmp.eq.s32.totalorder %s28, 0
      %p214 = por %p212, %p213
      %s215 = ssub.s32 %s30, %s37
      %p216 = scmp.eq.s32.totalorder %s215, 0
      %s218 = sadd.s32 %s217, 1
      %s219 = scalar_select %p216, %s217, %s218
      %p222 = pneg %p216
      %p223 = scmp.eq.s32.totalorder %s22, 3
      %p224 = por %p222, %p223
      %p225 = scmp.ne.s32.totalorder %s217, %s220
      %p226 = scmp.eq.s32.totalorder %s22, 0
      %p227 = por %p225, %p226
      %p228 = scmp.ne.s32.totalorder %s217, %s220
      %p229 = scmp.eq.s32.totalorder %s27, 3
      %p230 = por %p228, %p229
      %p231 = scmp.ne.s32.totalorder %s220, %s221
      %p232 = scmp.eq.s32.totalorder %s27, 0
      %p233 = por %p231, %p232
      %p234 = scmp.ne.s32.totalorder %s220, %s221
      %p235 = scmp.eq.s32.totalorder %s28, 3
      %p236 = por %p234, %p235
      %p238 = scmp.ne.s32.totalorder %s221, %s237
      %p239 = scmp.eq.s32.totalorder %s28, 0
      %p240 = por %p238, %p239
      %s241 = ssub.s32 %s29, %s41
      %s242 = ssub.s32 %s30, %s37
      %s243 = sor.u32 %s241, %s242
      %p244 = scmp.eq.s32.totalorder %s243, 0
      %s246 = sadd.s32 %s245, 1
      %s247 = scalar_select %p244, %s245, %s246
      %p250 = pneg %p244
      %p251 = scmp.eq.s32.totalorder %s22, 3
      %p252 = por %p250, %p251
      %p253 = scmp.ne.s32.totalorder %s245, %s248
      %p254 = scmp.eq.s32.totalorder %s22, 0
      %p255 = por %p253, %p254
      %p256 = scmp.ne.s32.totalorder %s245, %s248
      %p257 = scmp.eq.s32.totalorder %s27, 3
      %p258 = por %p256, %p257
      %p259 = scmp.ne.s32.totalorder %s248, %s249
      %p260 = scmp.eq.s32.totalorder %s27, 0
      %p261 = por %p259, %p260
      %p262 = scmp.ne.s32.totalorder %s248, %s249
      %p263 = scmp.eq.s32.totalorder %s28, 3
      %p264 = por %p262, %p263
      %p266 = scmp.ne.s32.totalorder %s249, %s265
      %p267 = scmp.eq.s32.totalorder %s28, 0
      %p268 = por %p266, %p267
      %p269 = scmp.le.s32.totalorder 1, %s22
      %p270 = scmp.lt.s32.totalorder %s22, 5
      %p271 = pnand %p269, %p270
      %p272 = pneg %p271
      // Predicated region
      $region9: #{tpu_custom_call.1} parent=5 // pred_check
        _
      $region10: #{tpu_custom_call.1} parent=5 // pred_check_branch
        %274 = sbr.rel (%p271) target = $region12
      $region11: #{tpu_custom_call.1} parent=5 // pred_region
        %s275 = ssub.s32 %s22, 1
        // Predicated region
        $region13: #{tpu_custom_call.1} parent=11 // pred_check
          %p276 = pneg %p81
        $region14: #{tpu_custom_call.1} parent=11 // pred_check_branch
          %278 = sbr.rel (%p276) target = $region16
        $region15: #{tpu_custom_call.1} parent=11 // pred_region
          _
        $region16: #{tpu_custom_call.1} parent=11 // pred_fallthru
          _
        // Predicated region
        $region17: #{tpu_custom_call.1} parent=11 // pred_check
          %p279 = pneg %p102
        $region18: #{tpu_custom_call.1} parent=11 // pred_check_branch
          %281 = sbr.rel (%p279) target = $region20
        $region19: #{tpu_custom_call.1} parent=11 // pred_region
          _
        $region20: #{tpu_custom_call.1} parent=11 // pred_fallthru
          _
        // Predicated region
        $region21: #{tpu_custom_call.1} parent=11 // pred_check
          %p282 = pneg %p123
        $region22: #{tpu_custom_call.1} parent=11 // pred_check_branch
          %284 = sbr.rel (%p282) target = $region24
        $region23: #{tpu_custom_call.1} parent=11 // pred_region
          _
        $region24: #{tpu_custom_call.1} parent=11 // pred_fallthru
          _
        // Predicated region
        $region25: #{tpu_custom_call.1} parent=11 // pred_check
          %p285 = pneg %p144
        $region26: #{tpu_custom_call.1} parent=11 // pred_check_branch
          %287 = sbr.rel (%p285) target = $region28
        $region27: #{tpu_custom_call.1} parent=11 // pred_region
          _
        $region28: #{tpu_custom_call.1} parent=11 // pred_fallthru
          _
        // Predicated region
        $region29: #{tpu_custom_call.1} parent=11 // pred_check
          %p288 = pneg %p165
        $region30: #{tpu_custom_call.1} parent=11 // pred_check_branch
          %290 = sbr.rel (%p288) target = $region32
        $region31: #{tpu_custom_call.1} parent=11 // pred_region
          _
        $region32: #{tpu_custom_call.1} parent=11 // pred_fallthru
          _
        // Predicated region
        $region33: #{tpu_custom_call.1} parent=11 // pred_check
          %p291 = pneg %p186
        $region34: #{tpu_custom_call.1} parent=11 // pred_check_branch
          %293 = sbr.rel (%p291) target = $region36
        $region35: #{tpu_custom_call.1} parent=11 // pred_region
          %s295 = ssub.s32 1024, 1024
          %296 = vsyncadd [#allocation7], %s295
          %s297 = sshll.u32 [#allocation6], 4
          %s298 = int_to_ptr.vmem [resolvable:$true] %s297
          %303 = dma.hbm_to_vmem [thread:$0]  %s6, 1024, %s298, [#allocation7], 64, 64, 4
        $region36: #{tpu_custom_call.1} parent=11 // pred_fallthru
          _
        // Predicated region
        $region37: #{tpu_custom_call.1} parent=11 // pred_check
          %p304 = pneg %p207
        $region38: #{tpu_custom_call.1} parent=11 // pred_check_branch
          %306 = sbr.rel (%p304) target = $region40
        $region39: #{tpu_custom_call.1} parent=11 // pred_region
          _
        $region40: #{tpu_custom_call.1} parent=11 // pred_fallthru
          _
      $region12: #{tpu_custom_call.1} parent=5 // pred_fallthru
        _
      %p307 = scmp.lt.s32.totalorder %s22, 4
      // Predicated region
      $region41: #{tpu_custom_call.1} parent=5 // pred_check
        %p308 = pneg %p307
      $region42: #{tpu_custom_call.1} parent=5 // pred_check_branch
        %310 = sbr.rel (%p308) target = $region44
      $region43: #{tpu_custom_call.1} parent=5 // pred_region
        // Predicated region
        $region45: #{tpu_custom_call.1} parent=43 // pred_check
          %p311 = pneg %p54
        $region46: #{tpu_custom_call.1} parent=43 // pred_check_branch
          %313 = sbr.rel (%p311) target = $region48
        $region47: #{tpu_custom_call.1} parent=43 // pred_region
          %s314 = sand.u32 %s44, 1
          %s315 = scalar_lea.sflag [#allocation4], %s314
          %s316 = sand.u32 %s44, 1
          %s317 = smul.addr %s316, 256
          %s318 = scalar_lea.vmem [#allocation3], %s317
          %s320 = ssub.s32 4096, 4096
          %321 = vsyncadd %s315, %s320
          %s322 = smul.addr %s29, 32
          %s323 = smul.addr %s322, 128
          %s324 = scalar_lea.hbm %s0, %s323
          %s325 = sshll.u32 %s318, 4
          %s326 = int_to_ptr.vmem [resolvable:$true] %s325
          %331 = dma.hbm_to_vmem [thread:$0]  %s324, 4096, %s326, %s315, 128, 128, 8
        $region48: #{tpu_custom_call.1} parent=43 // pred_fallthru
          _
        // Predicated region
        $region49: #{tpu_custom_call.1} parent=43 // pred_check
          %p332 = pneg %p227
        $region50: #{tpu_custom_call.1} parent=43 // pred_check_branch
          %334 = sbr.rel (%p332) target = $region52
        $region51: #{tpu_custom_call.1} parent=43 // pred_region
          %s335 = smul.u32 16, %s30
          %p336 = scmp.lt.s32.totalorder %s335, 31
          %s337 = scalar_select %p336, %s335, 31
          %s338 = smul.addr %s337, 4
          %s339 = scalar_lea.vmem %s8, %s338
          %s340 = smul.u32 16, %s30
        $region52: #{tpu_custom_call.1} parent=43 // pred_fallthru
          _
      $region44: #{tpu_custom_call.1} parent=5 // pred_fallthru
        _
      %p341 = scmp.le.s32.totalorder 1, %s22
      %p342 = scmp.lt.s32.totalorder %s22, 5
      %p343 = pnand %p341, %p342
      %p344 = pneg %p343
      // Predicated region
      $region53: #{tpu_custom_call.1} parent=5 // pred_check
        _
      $region54: #{tpu_custom_call.1} parent=5 // pred_check_branch
        %346 = sbr.rel (%p343) target = $region56
      $region55: #{tpu_custom_call.1} parent=5 // pred_region
        %s347 = ssub.s32 %s22, 1
        %s348 = sand.u32 %s47, 1
        %s349 = scalar_lea.sflag [#allocation4], %s348
        %s350 = sand.u32 %s47, 1
        %s351 = smul.addr %s350, 256
        %s352 = scalar_lea.vmem [#allocation3], %s351
        // Predicated region
        $region57: #{tpu_custom_call.1} parent=55 // pred_check
          %p353 = pneg %p60
        $region58: #{tpu_custom_call.1} parent=55 // pred_check_branch
          %355 = sbr.rel (%p353) target = $region60
        $region59: #{tpu_custom_call.1} parent=55 // pred_region
          %356 = dma.done %s349, 4096
        $region60: #{tpu_custom_call.1} parent=55 // pred_fallthru
          _
        // Predicated region
        $region61: #{tpu_custom_call.1} parent=55 // pred_check
          %p357 = pneg %p186
        $region62: #{tpu_custom_call.1} parent=55 // pred_check_branch
          %359 = sbr.rel (%p357) target = $region64
        $region63: #{tpu_custom_call.1} parent=55 // pred_region
          %360 = dma.done [#allocation7], 1024
        $region64: #{tpu_custom_call.1} parent=55 // pred_fallthru
          _
        %s361 = sand.u32 %s47, 1
        %s362 = scalar_lea.sflag [#allocation4], %s361
        %s363 = sand.u32 %s47, 1
        %s364 = smul.addr %s363, 256
        %s365 = scalar_lea.vmem [#allocation3], %s364
        %p366 = pneg %p60
        %p367 = pneg %p57
        %p368 = pneg %p81
        %p369 = pneg %p78
        %p370 = pneg %p102
        %p371 = pneg %p99
        %p372 = pneg %p123
        %p373 = pneg %p120
        %p374 = pneg %p144
        %p375 = pneg %p141
        %p376 = pneg %p165
        %p377 = pneg %p162
        %p378 = pneg %p186
        %p379 = pneg %p183
        %p380 = pneg %p207
        %p381 = pneg %p204
        %s382 = smul.u32 16, %s32
        %p383 = scmp.lt.s32.totalorder %s382, 31
        %s384 = scalar_select %p383, %s382, 31
        %s385 = smul.addr %s384, 4
        %s386 = scalar_lea.vmem %s8, %s385
        %p387 = pneg %p233
        %p388 = pneg %p230
        %p389 = pneg %p261
        %p390 = pneg %p258
        %s391 = sand.u32 %s248, 1
        %s392 = scalar_lea.sflag [#allocation5], %s391
        %s393 = sand.u32 %s248, 1
        %s394 = smul.addr %s393, 64
        %s395 = scalar_lea.vmem [#allocation8], %s394
        %s396 = smul.u32 16, %s32
        %p397 = scmp.lt.s32.totalorder %s396, 31
        %s398 = scalar_select %p397, %s396, 31
        %s399 = smul.addr %s398, 4
        %s400 = scalar_lea.vmem %s8, %s399
        %s401 = smul.u32 16, %s32
        %s402 = smul.u32 16, %s32
        %p404 = scmp.eq.s32.totalorder %s32, 0
        // Predicated region
        $region65: #{tpu_custom_call.1} parent=55 // pred_check
          %p405 = pneg %p404
        $region66: #{tpu_custom_call.1} parent=55 // pred_check_branch
          %407 = sbr.rel (%p405) target = $region68
        $region67: #{tpu_custom_call.1} parent=55 // pred_region
          %v408 = vld [vmem:[%s352] sm:$0xff]
          %v409 = vld [vmem:[%s352 + $0x8] sm:$0xff]
          %v410 = vld [vmem:[%s352 + $0x10] sm:$0xff]
          %v411 = vld [vmem:[%s352 + $0x18] sm:$0xff]
          %v412 = vld [vmem:[%s352 + $0x20] sm:$0xff]
          %v413 = vld [vmem:[%s352 + $0x28] sm:$0xff]
          %v414 = vld [vmem:[%s352 + $0x30] sm:$0xff]
          %v415 = vld [vmem:[%s352 + $0x38] sm:$0xff]
          %v416 = vld [vmem:[%s352 + $0x40] sm:$0xff]
          %v417 = vld [vmem:[%s352 + $0x48] sm:$0xff]
          %v418 = vld [vmem:[%s352 + $0x50] sm:$0xff]
          %v419 = vld [vmem:[%s352 + $0x58] sm:$0xff]
          %v420 = vld [vmem:[%s352 + $0x60] sm:$0xff]
          %v421 = vld [vmem:[%s352 + $0x68] sm:$0xff]
          %v422 = vld [vmem:[%s352 + $0x70] sm:$0xff]
          %v423 = vld [vmem:[%s352 + $0x78] sm:$0xff]
          %v424 = vld [vmem:[%s352 + $0x80] sm:$0xff]
          %v425 = vld [vmem:[%s352 + $0x88] sm:$0xff]
          %v426 = vld [vmem:[%s352 + $0x90] sm:$0xff]
          %v427 = vld [vmem:[%s352 + $0x98] sm:$0xff]
          %v428 = vld [vmem:[%s352 + $0xa0] sm:$0xff]
          %v429 = vld [vmem:[%s352 + $0xa8] sm:$0xff]
          %v430 = vld [vmem:[%s352 + $0xb0] sm:$0xff]
          %v431 = vld [vmem:[%s352 + $0xb8] sm:$0xff]
          %v432 = vld [vmem:[%s352 + $0xc0] sm:$0xff]
          %v433 = vld [vmem:[%s352 + $0xc8] sm:$0xff]
          %v434 = vld [vmem:[%s352 + $0xd0] sm:$0xff]
          %v435 = vld [vmem:[%s352 + $0xd8] sm:$0xff]
          %v436 = vld [vmem:[%s352 + $0xe0] sm:$0xff]
          %v437 = vld [vmem:[%s352 + $0xe8] sm:$0xff]
          %v438 = vld [vmem:[%s352 + $0xf0] sm:$0xff]
          %v439 = vld [vmem:[%s352 + $0xf8] sm:$0xff]
          %v440 = vpack.c.bf16 %v409, %v408
          %v441 = vpack.c.bf16 %v411, %v410
          %v442 = vpack.c.bf16 %v413, %v412
          %v443 = vpack.c.bf16 %v415, %v414
          %v444 = vpack.c.bf16 %v417, %v416
          %v445 = vpack.c.bf16 %v419, %v418
          %v446 = vpack.c.bf16 %v421, %v420
          %v447 = vpack.c.bf16 %v423, %v422
          %v448 = vpack.c.bf16 %v425, %v424
          %v449 = vpack.c.bf16 %v427, %v426
          %v450 = vpack.c.bf16 %v429, %v428
          %v451 = vpack.c.bf16 %v431, %v430
          %v452 = vpack.c.bf16 %v433, %v432
          %v453 = vpack.c.bf16 %v435, %v434
          %v454 = vpack.c.bf16 %v437, %v436
          %v455 = vpack.c.bf16 %v439, %v438
          %v456 = vld [vmem:[%s1] sm:$0xff]
          %v457 = vld [vmem:[%s1 + $0x8] sm:$0xff]
          %v458 = vld [vmem:[%s1 + $0x10] sm:$0xff]
          %v459 = vld [vmem:[%s1 + $0x18] sm:$0xff]
          %v460 = vld [vmem:[%s1 + $0x20] sm:$0xff]
          %v461 = vld [vmem:[%s1 + $0x28] sm:$0xff]
          %v462 = vld [vmem:[%s1 + $0x30] sm:$0xff]
          %v463 = vld [vmem:[%s1 + $0x38] sm:$0xff]
          %v472 = vunpack.c.l.b16 %v456
          %v473 = vunpack.c.h.b16 %v456
          %v474 = vunpack.c.l.b16 %v457
          %v475 = vunpack.c.h.b16 %v457
          %v476 = vunpack.c.l.b16 %v458
          %v477 = vunpack.c.h.b16 %v458
          %v478 = vunpack.c.l.b16 %v459
          %v479 = vunpack.c.h.b16 %v459
          %v480 = vunpack.c.l.b16 %v460
          %v481 = vunpack.c.h.b16 %v460
          %v482 = vunpack.c.l.b16 %v461
          %v483 = vunpack.c.h.b16 %v461
          %v484 = vunpack.c.l.b16 %v462
          %v485 = vunpack.c.h.b16 %v462
          %v486 = vunpack.c.l.b16 %v463
          %v487 = vunpack.c.h.b16 %v463
          %v488 = vpack.c.b16 %v474, %v472
          %v489 = vpack.c.b16 %v475, %v473
          %v490 = vpack.c.b16 %v478, %v476
          %v491 = vpack.c.b16 %v479, %v477
          %v492 = vpack.c.b16 %v482, %v480
          %v493 = vpack.c.b16 %v483, %v481
          %v494 = vpack.c.b16 %v486, %v484
          %v495 = vpack.c.b16 %v487, %v485
          %504 = vmatprep.subr.bf16.mxu0 0
          %505 = vmatpush1.bf16.msra.mxu0 %v447
          %506 = vmatprep.subr.bf16.mxu0 0
          %507 = vmatpush1.bf16.msra.mxu0 %v446
          %508 = vmatprep.subr.bf16.mxu0 0
          %509 = vmatpush1.bf16.msra.mxu0 %v445
          %510 = vmatprep.subr.bf16.mxu0 0
          %511 = vmatpush1.bf16.msra.mxu0 %v444
          %512 = vmatprep.subr.bf16.mxu0 0
          %513 = vmatpush1.bf16.msra.mxu0 %v443
          %514 = vmatprep.subr.bf16.mxu0 0
          %515 = vmatpush1.bf16.msra.mxu0 %v442
          %516 = vmatprep.subr.bf16.mxu0 0
          %517 = vmatpush1.bf16.msra.mxu0 %v441
          %518 = vmatprep.subr.bf16.mxu0 0
          %519 = vmatpush1.bf16.msra.mxu0 %v440
          %520 = vmatprep.subr.bf16.mxu0 0
          %521 = vmatpush2.bf16.msra.mxu0 %v455
          %522 = vmatprep.subr.bf16.mxu0 0
          %523 = vmatpush2.bf16.msra.mxu0 %v454
          %524 = vmatprep.subr.bf16.mxu0 0
          %525 = vmatpush2.bf16.msra.mxu0 %v453
          %526 = vmatprep.subr.bf16.mxu0 0
          %527 = vmatpush2.bf16.msra.mxu0 %v452
          %528 = vmatprep.subr.bf16.mxu0 0
          %529 = vmatpush2.bf16.msra.mxu0 %v451
          %530 = vmatprep.subr.bf16.mxu0 0
          %531 = vmatpush2.bf16.msra.mxu0 %v450
          %532 = vmatprep.subr.bf16.mxu0 0
          %533 = vmatpush2.bf16.msra.mxu0 %v449
          %534 = vmatprep.subr.bf16.mxu0 0
          %535 = vmatpush2.bf16.msra.mxu0 %v448
          %536 = vmatprep.mubr.bf16.mxu0 %v489
          %537 = vmatmul.mubr.bf16.gmra.mxu0 %v488
          %v538 = vpop.f32.mrf.mxu0
          %v539 = vadd.f32 0.0, %v538
          %v540 = vpop.f32.mrf.mxu0
          %v541 = vpop.f32.mrf.mxu0
          %v542 = vadd.f32 0.0, %v541
          %v543 = vpop.f32.mrf.mxu0
          %544 = vmatprep.mubr.bf16.mxu0 %v491
          %545 = vmatmul.mubr.bf16.gmra.mxu0 %v490
          %v546 = vpop.f32.mrf.mxu0
          %v547 = vadd.f32 0.0, %v546
          %v548 = vpop.f32.mrf.mxu0
          %v549 = vpop.f32.mrf.mxu0
          %v550 = vadd.f32 0.0, %v549
          %v551 = vpop.f32.mrf.mxu0
          %552 = vmatprep.mubr.bf16.mxu0 %v493
          %553 = vmatmul.mubr.bf16.gmra.mxu0 %v492
          %v554 = vpop.f32.mrf.mxu0
          %v555 = vadd.f32 0.0, %v554
          %v556 = vpop.f32.mrf.mxu0
          %v557 = vpop.f32.mrf.mxu0
          %v558 = vadd.f32 0.0, %v557
          %v559 = vpop.f32.mrf.mxu0
          %560 = vmatprep.mubr.bf16.mxu0 %v495
          %561 = vmatmul.mubr.bf16.gmra.mxu0 %v494
          %v562 = vpop.f32.mrf.mxu0
          %v563 = vadd.f32 0.0, %v562
          %v564 = vpop.f32.mrf.mxu0
          %v565 = vpop.f32.mrf.mxu0
          %v566 = vadd.f32 0.0, %v565
          %v567 = vpop.f32.mrf.mxu0
          %568 = vdwg.mxu0
          %v569 = vld [vmem:[%s2] sm:$0xff]
          %v570 = vld [vmem:[%s2 + $0x8] sm:$0xff]
          %v571 = vld [vmem:[%s2 + $0x10] sm:$0xff]
          %v572 = vld [vmem:[%s2 + $0x18] sm:$0xff]
          %v573 = vld [vmem:[%s2 + $0x20] sm:$0xff]
          %v574 = vld [vmem:[%s2 + $0x28] sm:$0xff]
          %v575 = vld [vmem:[%s2 + $0x30] sm:$0xff]
          %v576 = vld [vmem:[%s2 + $0x38] sm:$0xff]
          %578 = vset.pattern.permute.xlu0 0
          %579 = vperm.xlu0 %578, %v569
          %v580 = vpop.permute.xlu0 %579
          %583 = vset.pattern.permute.xlu0 0
          %584 = vperm.xlu0 %583, %v570
          %v585 = vpop.permute.xlu0 %584
          %588 = vset.pattern.permute.xlu0 0
          %589 = vperm.xlu0 %588, %v571
          %v590 = vpop.permute.xlu0 %589
          %593 = vset.pattern.permute.xlu0 0
          %594 = vperm.xlu0 %593, %v572
          %v595 = vpop.permute.xlu0 %594
          %598 = vset.pattern.permute.xlu0 0
          %599 = vperm.xlu0 %598, %v573
          %v600 = vpop.permute.xlu0 %599
          %603 = vset.pattern.permute.xlu0 0
          %604 = vperm.xlu0 %603, %v574
          %v605 = vpop.permute.xlu0 %604
          %608 = vset.pattern.permute.xlu0 0
          %609 = vperm.xlu0 %608, %v575
          %v610 = vpop.permute.xlu0 %609
          %613 = vset.pattern.permute.xlu0 0
          %614 = vperm.xlu0 %613, %v576
          %v615 = vpop.permute.xlu0 %614
          %v617 = vmul.f32 %v539, %v580
          %v618 = vmul.f32 %v542, %v585
          %v619 = vmul.f32 %v547, %v590
          %v620 = vmul.f32 %v550, %v595
          %v621 = vmul.f32 %v555, %v600
          %v622 = vmul.f32 %v558, %v605
          %v623 = vmul.f32 %v563, %v610
          %v624 = vmul.f32 %v566, %v615
          %v625 = vpack.c.bf16 %v618, %v617
          %v626 = vpack.c.bf16 %v620, %v619
          %v627 = vpack.c.bf16 %v622, %v621
          %v628 = vpack.c.bf16 %v624, %v623
          %v629 = vld [vmem:[%s3] sm:$0xf]
          %v630 = vld [vmem:[%s3 + $0x4] sm:$0xf]
          %v631 = vld [vmem:[%s3 + $0x8] sm:$0xf]
          %v632 = vld [vmem:[%s3 + $0xc] sm:$0xf]
          %v633 = vld [vmem:[%s3 + $0x10] sm:$0xf]
          %v634 = vld [vmem:[%s3 + $0x14] sm:$0xf]
          %v635 = vld [vmem:[%s3 + $0x18] sm:$0xf]
          %v636 = vld [vmem:[%s3 + $0x1c] sm:$0xf]
          %v637 = vld [vmem:[%s3 + $0x20] sm:$0xf]
          %v638 = vld [vmem:[%s3 + $0x24] sm:$0xf]
          %v639 = vld [vmem:[%s3 + $0x28] sm:$0xf]
          %v640 = vld [vmem:[%s3 + $0x2c] sm:$0xf]
          %v641 = vld [vmem:[%s3 + $0x30] sm:$0xf]
          %v642 = vld [vmem:[%s3 + $0x34] sm:$0xf]
          %v643 = vld [vmem:[%s3 + $0x38] sm:$0xf]
          %v644 = vld [vmem:[%s3 + $0x3c] sm:$0xf]
          %v645 = vld [vmem:[%s4] sm:$0x1]
          %v647 = vlaneseq
          %v648 = vshrl.u32 %v647, 7
          %v649 = vsub.s32 0, %v648
          %v650 = vrot.slane %v645, %v649
          %v668 = vunpack.c.l.b16 %v629
          %v669 = vunpack.c.l.b16 %v630
          %v670 = vunpack.c.l.b16 %v631
          %v671 = vunpack.c.l.b16 %v632
          %v672 = vunpack.c.l.b16 %v633
          %v673 = vunpack.c.l.b16 %v634
          %v674 = vunpack.c.l.b16 %v635
          %v675 = vunpack.c.l.b16 %v636
          %v676 = vunpack.c.l.b16 %v637
          %v677 = vunpack.c.l.b16 %v638
          %v678 = vunpack.c.l.b16 %v639
          %v679 = vunpack.c.l.b16 %v640
          %v680 = vunpack.c.l.b16 %v641
          %v681 = vunpack.c.l.b16 %v642
          %v682 = vunpack.c.l.b16 %v643
          %v683 = vunpack.c.l.b16 %v644
          %v684 = vpack.c.b16 %v669, %v668
          %v685 = vpack.c.b16 %v671, %v670
          %v686 = vpack.c.b16 %v673, %v672
          %v687 = vpack.c.b16 %v675, %v674
          %v688 = vpack.c.b16 %v677, %v676
          %v689 = vpack.c.b16 %v679, %v678
          %v690 = vpack.c.b16 %v681, %v680
          %v691 = vpack.c.b16 %v683, %v682
          %700 = vmatprep.subr.bf16.mxu0 0
          %701 = vmatpush1.bf16.msra.mxu0 %v691
          %702 = vmatprep.subr.bf16.mxu0 0
          %703 = vmatpush1.bf16.msra.mxu0 %v690
          %704 = vmatprep.subr.bf16.mxu0 0
          %705 = vmatpush1.bf16.msra.mxu0 %v689
          %706 = vmatprep.subr.bf16.mxu0 0
          %707 = vmatpush1.bf16.msra.mxu0 %v688
          %708 = vmatprep.subr.bf16.mxu0 0
          %709 = vmatpush1.bf16.msra.mxu0 %v687
          %710 = vmatprep.subr.bf16.mxu0 0
          %711 = vmatpush1.bf16.msra.mxu0 %v686
          %712 = vmatprep.subr.bf16.mxu0 0
          %713 = vmatpush1.bf16.msra.mxu0 %v685
          %714 = vmatprep.subr.bf16.mxu0 0
          %715 = vmatpush1.bf16.msra.mxu0 %v684
          %716 = vmatprep.subr.bf16.mxu0 0
          %717 = vmatpush2.bf16.msra.mxu0 0
          %718 = vmatprep.subr.bf16.mxu0 0
          %719 = vmatpush2.bf16.msra.mxu0 0
          %720 = vmatprep.subr.bf16.mxu0 0
          %721 = vmatpush2.bf16.msra.mxu0 0
          %722 = vmatprep.subr.bf16.mxu0 0
          %723 = vmatpush2.bf16.msra.mxu0 0
          %724 = vmatprep.subr.bf16.mxu0 0
          %725 = vmatpush2.bf16.msra.mxu0 0
          %726 = vmatprep.subr.bf16.mxu0 0
          %727 = vmatpush2.bf16.msra.mxu0 0
          %728 = vmatprep.subr.bf16.mxu0 0
          %729 = vmatpush2.bf16.msra.mxu0 0
          %730 = vmatprep.subr.bf16.mxu0 0
          %731 = vmatpush2.bf16.msra.mxu0 0
          %732 = vmatprep.mubr.bf16.mxu0 0
          %733 = vmatmul.mubr.bf16.gmra.mxu0 %v625
          %v734 = vpop.f32.mrf.mxu0
          %v735 = vadd.f32 %v650, %v734
          %v736 = vpop.f32.mrf.mxu0
          %v737 = vpop.f32.mrf.mxu0
          %v738 = vadd.f32 %v650, %v737
          %v739 = vpop.f32.mrf.mxu0
          %740 = vmatprep.mubr.bf16.mxu0 0
          %741 = vmatmul.mubr.bf16.gmra.mxu0 %v626
          %v742 = vpop.f32.mrf.mxu0
          %v743 = vadd.f32 %v650, %v742
          %v744 = vpop.f32.mrf.mxu0
          %v745 = vpop.f32.mrf.mxu0
          %v746 = vadd.f32 %v650, %v745
          %v747 = vpop.f32.mrf.mxu0
          %748 = vmatprep.mubr.bf16.mxu0 0
          %749 = vmatmul.mubr.bf16.gmra.mxu0 %v627
          %v750 = vpop.f32.mrf.mxu0
          %v751 = vadd.f32 %v650, %v750
          %v752 = vpop.f32.mrf.mxu0
          %v753 = vpop.f32.mrf.mxu0
          %v754 = vadd.f32 %v650, %v753
          %v755 = vpop.f32.mrf.mxu0
          %756 = vmatprep.mubr.bf16.mxu0 0
          %757 = vmatmul.mubr.bf16.gmra.mxu0 %v628
          %v758 = vpop.f32.mrf.mxu0
          %v759 = vadd.f32 %v650, %v758
          %v760 = vpop.f32.mrf.mxu0
          %v761 = vpop.f32.mrf.mxu0
          %v762 = vadd.f32 %v650, %v761
          %v763 = vpop.f32.mrf.mxu0
          %764 = vdwg.mxu0
          %v765 = vmax.f32 %v735, 0.0
          %v766 = vmax.f32 %v738, 0.0
          %v767 = vmax.f32 %v743, 0.0
          %v768 = vmax.f32 %v746, 0.0
          %v769 = vmax.f32 %v751, 0.0
          %v770 = vmax.f32 %v754, 0.0
          %v771 = vmax.f32 %v759, 0.0
          %v772 = vmax.f32 %v762, 0.0
          %v773 = vlaneseq
          %v774 = vshrl.u32 %v773, 7
          %v775 = vadd.s32 %v774, 8
          %v776 = vadd.s32 %v774, 16
          %v777 = vadd.s32 %v774, 24
          %v778 = vadd.s32 %v774, 32
          %v779 = vadd.s32 %v774, 40
          %v780 = vadd.s32 %v774, 48
          %v781 = vadd.s32 %v774, 56
          %v782 = vlaneseq
          %v783 = vand.u32 %v782, 127
          %vm784 = vcmp.ge.s32.totalorder %v774, 1
          %vm785 = vcmp.ge.s32.totalorder %v775, 1
          %vm786 = vcmp.ge.s32.totalorder %v776, 1
          %vm787 = vcmp.ge.s32.totalorder %v777, 1
          %vm788 = vcmp.ge.s32.totalorder %v778, 1
          %vm789 = vcmp.ge.s32.totalorder %v779, 1
          %vm790 = vcmp.ge.s32.totalorder %v780, 1
          %vm791 = vcmp.ge.s32.totalorder %v781, 1
          %v792 = vsel %vm784, 1, 0
          %v793 = vsel %vm785, 1, 0
          %v794 = vsel %vm786, 1, 0
          %v795 = vsel %vm787, 1, 0
          %v796 = vsel %vm788, 1, 0
          %v797 = vsel %vm789, 1, 0
          %v798 = vsel %vm790, 1, 0
          %v799 = vsel %vm791, 1, 0
          %vm800 = vcmp.ge.s32.totalorder %v774, 5
          %vm801 = vcmp.ge.s32.totalorder %v775, 5
          %vm802 = vcmp.ge.s32.totalorder %v776, 5
          %vm803 = vcmp.ge.s32.totalorder %v777, 5
          %vm804 = vcmp.ge.s32.totalorder %v778, 5
          %vm805 = vcmp.ge.s32.totalorder %v779, 5
          %vm806 = vcmp.ge.s32.totalorder %v780, 5
          %vm807 = vcmp.ge.s32.totalorder %v781, 5
          %v808 = vsel %vm800, 1, 0
          %v809 = vsel %vm801, 1, 0
          %v810 = vsel %vm802, 1, 0
          %v811 = vsel %vm803, 1, 0
          %v812 = vsel %vm804, 1, 0
          %v813 = vsel %vm805, 1, 0
          %v814 = vsel %vm806, 1, 0
          %v815 = vsel %vm807, 1, 0
          %v816 = vadd.s32 %v792, %v808
          %v817 = vadd.s32 %v793, %v809
          %v818 = vadd.s32 %v794, %v810
          %v819 = vadd.s32 %v795, %v811
          %v820 = vadd.s32 %v796, %v812
          %v821 = vadd.s32 %v797, %v813
          %v822 = vadd.s32 %v798, %v814
          %v823 = vadd.s32 %v799, %v815
          %vm824 = vcmp.ge.s32.totalorder %v774, 14
          %vm825 = vcmp.ge.s32.totalorder %v775, 14
          %vm826 = vcmp.ge.s32.totalorder %v776, 14
          %vm827 = vcmp.ge.s32.totalorder %v777, 14
          %vm828 = vcmp.ge.s32.totalorder %v778, 14
          %vm829 = vcmp.ge.s32.totalorder %v779, 14
          %vm830 = vcmp.ge.s32.totalorder %v780, 14
          %vm831 = vcmp.ge.s32.totalorder %v781, 14
          %v832 = vsel %vm824, 1, 0
          %v833 = vsel %vm825, 1, 0
          %v834 = vsel %vm826, 1, 0
          %v835 = vsel %vm827, 1, 0
          %v836 = vsel %vm828, 1, 0
          %v837 = vsel %vm829, 1, 0
          %v838 = vsel %vm830, 1, 0
          %v839 = vsel %vm831, 1, 0
          %v840 = vadd.s32 %v816, %v832
          %v841 = vadd.s32 %v817, %v833
          %v842 = vadd.s32 %v818, %v834
          %v843 = vadd.s32 %v819, %v835
          %v844 = vadd.s32 %v820, %v836
          %v845 = vadd.s32 %v821, %v837
          %v846 = vadd.s32 %v822, %v838
          %v847 = vadd.s32 %v823, %v839
          %vm848 = vcmp.ge.s32.totalorder %v783, 32
          %v849 = vsel %vm848, 1, 0
          %vm850 = vcmp.ge.s32.totalorder %v783, 64
          %v851 = vsel %vm850, 1, 0
          %v852 = vadd.s32 %v849, %v851
          %vm853 = vcmp.ge.s32.totalorder %v783, 96
          %v854 = vsel %vm853, 1, 0
          %v855 = vadd.s32 %v852, %v854
          %vm856 = vcmp.eq.s32.totalorder %v840, %v855
          %vm857 = vcmp.eq.s32.totalorder %v841, %v855
          %vm858 = vcmp.eq.s32.totalorder %v842, %v855
          %vm859 = vcmp.eq.s32.totalorder %v843, %v855
          %vm860 = vcmp.eq.s32.totalorder %v844, %v855
          %vm861 = vcmp.eq.s32.totalorder %v845, %v855
          %vm862 = vcmp.eq.s32.totalorder %v846, %v855
          %vm863 = vcmp.eq.s32.totalorder %v847, %v855
          %vm864 = vcmp.lt.s32.totalorder %v774, 50
          %vm865 = vcmp.lt.s32.totalorder %v775, 50
          %vm866 = vcmp.lt.s32.totalorder %v776, 50
          %vm867 = vcmp.lt.s32.totalorder %v777, 50
          %vm868 = vcmp.lt.s32.totalorder %v778, 50
          %vm869 = vcmp.lt.s32.totalorder %v779, 50
          %vm870 = vcmp.lt.s32.totalorder %v780, 50
          %vm871 = vcmp.lt.s32.totalorder %v781, 50
          %vm872 = vmand %vm856, %vm864
          %vm873 = vmand %vm857, %vm865
          %vm874 = vmand %vm858, %vm866
          %vm875 = vmand %vm859, %vm867
          %vm876 = vmand %vm860, %vm868
          %vm877 = vmand %vm861, %vm869
          %vm878 = vmand %vm862, %vm870
          %vm879 = vmand %vm863, %vm871
          %v880 = vsel %vm872, %v765, 0.0
          %v881 = vsel %vm873, %v766, 0.0
          %v882 = vsel %vm874, %v767, 0.0
          %v883 = vsel %vm875, %v768, 0.0
          %v884 = vsel %vm876, %v769, 0.0
          %v885 = vsel %vm877, %v770, 0.0
          %v886 = vsel %vm878, %v771, 0.0
          %v887 = vsel %vm879, %v772, 0.0
          %v888 = vpack.c.bf16 %v881, %v880
          %v889 = vpack.c.bf16 %v883, %v882
          %v890 = vpack.c.bf16 %v885, %v884
          %v891 = vpack.c.bf16 %v887, %v886
          %v892 = vld [vmem:[#allocation6] sm:$0xf]
          %v893 = vld [vmem:[#allocation6 + $0x4] sm:$0xf]
          %v894 = vld [vmem:[#allocation6 + $0x8] sm:$0xf]
          %v895 = vld [vmem:[#allocation6 + $0xc] sm:$0xf]
          %v896 = vld [vmem:[#allocation6 + $0x10] sm:$0xf]
          %v897 = vld [vmem:[#allocation6 + $0x14] sm:$0xf]
          %v898 = vld [vmem:[#allocation6 + $0x18] sm:$0xf]
          %v899 = vld [vmem:[#allocation6 + $0x1c] sm:$0xf]
          %v900 = vld [vmem:[#allocation6 + $0x20] sm:$0xf]
          %v901 = vld [vmem:[#allocation6 + $0x24] sm:$0xf]
          %v902 = vld [vmem:[#allocation6 + $0x28] sm:$0xf]
          %v903 = vld [vmem:[#allocation6 + $0x2c] sm:$0xf]
          %v904 = vld [vmem:[#allocation6 + $0x30] sm:$0xf]
          %v905 = vld [vmem:[#allocation6 + $0x34] sm:$0xf]
          %v906 = vld [vmem:[#allocation6 + $0x38] sm:$0xf]
          %v907 = vld [vmem:[#allocation6 + $0x3c] sm:$0xf]
          %v924 = vunpack.c.l.b16 %v892
          %v925 = vunpack.c.l.b16 %v893
          %v926 = vunpack.c.l.b16 %v894
          %v927 = vunpack.c.l.b16 %v895
          %v928 = vunpack.c.l.b16 %v896
          %v929 = vunpack.c.l.b16 %v897
          %v930 = vunpack.c.l.b16 %v898
          %v931 = vunpack.c.l.b16 %v899
          %v932 = vunpack.c.l.b16 %v900
          %v933 = vunpack.c.l.b16 %v901
          %v934 = vunpack.c.l.b16 %v902
          %v935 = vunpack.c.l.b16 %v903
          %v936 = vunpack.c.l.b16 %v904
          %v937 = vunpack.c.l.b16 %v905
          %v938 = vunpack.c.l.b16 %v906
          %v939 = vunpack.c.l.b16 %v907
          %v940 = vpack.c.b16 %v925, %v924
          %v941 = vpack.c.b16 %v927, %v926
          %v942 = vpack.c.b16 %v929, %v928
          %v943 = vpack.c.b16 %v931, %v930
          %v944 = vpack.c.b16 %v933, %v932
          %v945 = vpack.c.b16 %v935, %v934
          %v946 = vpack.c.b16 %v937, %v936
          %v947 = vpack.c.b16 %v939, %v938
          %956 = vmatprep.subr.bf16.mxu0 0
          %957 = vmatpush1.bf16.msra.mxu0 %v947
          %958 = vmatprep.subr.bf16.mxu0 0
          %959 = vmatpush1.bf16.msra.mxu0 %v946
          %960 = vmatprep.subr.bf16.mxu0 0
          %961 = vmatpush1.bf16.msra.mxu0 %v945
          %962 = vmatprep.subr.bf16.mxu0 0
          %963 = vmatpush1.bf16.msra.mxu0 %v944
          %964 = vmatprep.subr.bf16.mxu0 0
          %965 = vmatpush1.bf16.msra.mxu0 %v943
          %966 = vmatprep.subr.bf16.mxu0 0
          %967 = vmatpush1.bf16.msra.mxu0 %v942
          %968 = vmatprep.subr.bf16.mxu0 0
          %969 = vmatpush1.bf16.msra.mxu0 %v941
          %970 = vmatprep.subr.bf16.mxu0 0
          %971 = vmatpush1.bf16.msra.mxu0 %v940
          %972 = vmatprep.subr.bf16.mxu0 0
          %973 = vmatpush2.bf16.msra.mxu0 0
          %974 = vmatprep.subr.bf16.mxu0 0
          %975 = vmatpush2.bf16.msra.mxu0 0
          %976 = vmatprep.subr.bf16.mxu0 0
          %977 = vmatpush2.bf16.msra.mxu0 0
          %978 = vmatprep.subr.bf16.mxu0 0
          %979 = vmatpush2.bf16.msra.mxu0 0
          %980 = vmatprep.subr.bf16.mxu0 0
          %981 = vmatpush2.bf16.msra.mxu0 0
          %982 = vmatprep.subr.bf16.mxu0 0
          %983 = vmatpush2.bf16.msra.mxu0 0
          %984 = vmatprep.subr.bf16.mxu0 0
          %985 = vmatpush2.bf16.msra.mxu0 0
          %986 = vmatprep.subr.bf16.mxu0 0
          %987 = vmatpush2.bf16.msra.mxu0 0
          %988 = vmatprep.mubr.bf16.mxu0 0
          %989 = vmatmul.mubr.bf16.gmra.mxu0 %v888
          %v990 = vpop.f32.mrf.mxu0
          %v991 = vadd.f32 0.0, %v990
          %v992 = vpop.f32.mrf.mxu0
          %v993 = vpop.f32.mrf.mxu0
          %v994 = vadd.f32 0.0, %v993
          %v995 = vpop.f32.mrf.mxu0
          %996 = vmatprep.mubr.bf16.mxu0 0
          %997 = vmatmul.mubr.bf16.gmra.mxu0 %v889
          %v998 = vpop.f32.mrf.mxu0
          %v999 = vadd.f32 0.0, %v998
          %v1000 = vpop.f32.mrf.mxu0
          %v1001 = vpop.f32.mrf.mxu0
          %v1002 = vadd.f32 0.0, %v1001
          %v1003 = vpop.f32.mrf.mxu0
          %1004 = vmatprep.mubr.bf16.mxu0 0
          %1005 = vmatmul.mubr.bf16.gmra.mxu0 %v890
          %v1006 = vpop.f32.mrf.mxu0
          %v1007 = vadd.f32 0.0, %v1006
          %v1008 = vpop.f32.mrf.mxu0
          %v1009 = vpop.f32.mrf.mxu0
          %v1010 = vadd.f32 0.0, %v1009
          %v1011 = vpop.f32.mrf.mxu0
          %1012 = vmatprep.mubr.bf16.mxu0 0
          %1013 = vmatmul.mubr.bf16.gmra.mxu0 %v891
          %v1014 = vpop.f32.mrf.mxu0
          %v1015 = vadd.f32 0.0, %v1014
          %v1016 = vpop.f32.mrf.mxu0
          %v1017 = vpop.f32.mrf.mxu0
          %v1018 = vadd.f32 0.0, %v1017
          %v1019 = vpop.f32.mrf.mxu0
          %1020 = vdwg.mxu0
          %v1021 = vpack.c.bf16 %v994, %v991
          %v1022 = vpack.c.bf16 %v1002, %v999
          %v1023 = vpack.c.bf16 %v1010, %v1007
          %v1024 = vpack.c.bf16 %v1018, %v1015
          %v1029 = vunpack.c.l.b16 %v1021
          %v1030 = vunpack.c.h.b16 %v1021
          %v1031 = vunpack.c.l.b16 %v1022
          %v1032 = vunpack.c.h.b16 %v1022
          %v1033 = vunpack.c.l.b16 %v1023
          %v1034 = vunpack.c.h.b16 %v1023
          %v1035 = vunpack.c.l.b16 %v1024
          %v1036 = vunpack.c.h.b16 %v1024
          %v1037 = vpack.c.b16 %v1029, %v1029
          %v1038 = vpack.c.b16 %v1030, %v1030
          %v1039 = vpack.c.b16 %v1031, %v1031
          %v1040 = vpack.c.b16 %v1032, %v1032
          %v1041 = vpack.c.b16 %v1033, %v1033
          %v1042 = vpack.c.b16 %v1034, %v1034
          %v1043 = vpack.c.b16 %v1035, %v1035
          %v1044 = vpack.c.b16 %v1036, %v1036
          %1053 = vst [vmem:[#allocation2] sm:$0xf] %v1037
          %1054 = vst [vmem:[#allocation2 + $0x4] sm:$0xf] %v1038
          %1055 = vst [vmem:[#allocation2 + $0x8] sm:$0xf] %v1039
          %1056 = vst [vmem:[#allocation2 + $0xc] sm:$0xf] %v1040
          %1057 = vst [vmem:[#allocation2 + $0x10] sm:$0xf] %v1041
          %1058 = vst [vmem:[#allocation2 + $0x14] sm:$0xf] %v1042
          %1059 = vst [vmem:[#allocation2 + $0x18] sm:$0xf] %v1043
          %1060 = vst [vmem:[#allocation2 + $0x1c] sm:$0xf] %v1044
        $region68: #{tpu_custom_call.1} parent=55 // pred_fallthru
          _
        %s1061 = smul.u32 %s32, 128
        %s1062 = scalar_lea.vmem %s352, %s1061 [#allocation3]
        %v1063 = vld [vmem:[%s1062] sm:$0xff]
        %v1064 = vld [vmem:[%s1062 + $0x8] sm:$0xff]
        %v1065 = vld [vmem:[%s1062 + $0x10] sm:$0xff]
        %v1066 = vld [vmem:[%s1062 + $0x18] sm:$0xff]
        %v1067 = vld [vmem:[%s1062 + $0x20] sm:$0xff]
        %v1068 = vld [vmem:[%s1062 + $0x28] sm:$0xff]
        %v1069 = vld [vmem:[%s1062 + $0x30] sm:$0xff]
        %v1070 = vld [vmem:[%s1062 + $0x38] sm:$0xff]
        %v1071 = vld [vmem:[%s1062 + $0x40] sm:$0xff]
        %v1072 = vld [vmem:[%s1062 + $0x48] sm:$0xff]
        %v1073 = vld [vmem:[%s1062 + $0x50] sm:$0xff]
        %v1074 = vld [vmem:[%s1062 + $0x58] sm:$0xff]
        %v1075 = vld [vmem:[%s1062 + $0x60] sm:$0xff]
        %v1076 = vld [vmem:[%s1062 + $0x68] sm:$0xff]
        %v1077 = vld [vmem:[%s1062 + $0x70] sm:$0xff]
        %v1078 = vld [vmem:[%s1062 + $0x78] sm:$0xff]
        %v1079 = vpack.c.bf16 %v1064, %v1063
        %v1080 = vpack.c.bf16 %v1066, %v1065
        %v1081 = vpack.c.bf16 %v1068, %v1067
        %v1082 = vpack.c.bf16 %v1070, %v1069
        %v1083 = vpack.c.bf16 %v1072, %v1071
        %v1084 = vpack.c.bf16 %v1074, %v1073
        %v1085 = vpack.c.bf16 %v1076, %v1075
        %v1086 = vpack.c.bf16 %v1078, %v1077
        %v1087 = vld [vmem:[%s5] sm:$0xf]
        %v1088 = vld [vmem:[%s5 + $0x4] sm:$0xf]
        %v1089 = vld [vmem:[%s5 + $0x8] sm:$0xf]
        %v1090 = vld [vmem:[%s5 + $0xc] sm:$0xf]
        %v1091 = vld [vmem:[%s5 + $0x10] sm:$0xf]
        %v1092 = vld [vmem:[%s5 + $0x14] sm:$0xf]
        %v1093 = vld [vmem:[%s5 + $0x18] sm:$0xf]
        %v1094 = vld [vmem:[%s5 + $0x1c] sm:$0xf]
        %v1095 = vld [vmem:[%s5 + $0x20] sm:$0xf]
        %v1096 = vld [vmem:[%s5 + $0x24] sm:$0xf]
        %v1097 = vld [vmem:[%s5 + $0x28] sm:$0xf]
        %v1098 = vld [vmem:[%s5 + $0x2c] sm:$0xf]
        %v1099 = vld [vmem:[%s5 + $0x30] sm:$0xf]
        %v1100 = vld [vmem:[%s5 + $0x34] sm:$0xf]
        %v1101 = vld [vmem:[%s5 + $0x38] sm:$0xf]
        %v1102 = vld [vmem:[%s5 + $0x3c] sm:$0xf]
        %v1103 = vld [vmem:[%s400] sm:$0xf]
        %v1104 = vld [vmem:[%s400 + $0x4] sm:$0xf]
        %v1105 = vld [vmem:[%s400 + $0x8] sm:$0xf]
        %v1106 = vld [vmem:[%s400 + $0xc] sm:$0xf]
        %v1107 = vld [vmem:[%s400 + $0x10] sm:$0xf]
        %v1108 = vld [vmem:[%s400 + $0x14] sm:$0xf]
        %v1109 = vld [vmem:[%s400 + $0x18] sm:$0xf]
        %v1110 = vld [vmem:[%s400 + $0x1c] sm:$0xf]
        %v1111 = vld [vmem:[%s400 + $0x20] sm:$0xf]
        %v1112 = vld [vmem:[%s400 + $0x24] sm:$0xf]
        %v1113 = vld [vmem:[%s400 + $0x28] sm:$0xf]
        %v1114 = vld [vmem:[%s400 + $0x2c] sm:$0xf]
        %v1115 = vld [vmem:[%s400 + $0x30] sm:$0xf]
        %v1116 = vld [vmem:[%s400 + $0x34] sm:$0xf]
        %v1117 = vld [vmem:[%s400 + $0x38] sm:$0xf]
        %v1118 = vld [vmem:[%s400 + $0x3c] sm:$0xf]
        %v1119 = vld [vmem:[#allocation2] sm:$0xf]
        %v1120 = vld [vmem:[#allocation2 + $0x4] sm:$0xf]
        %v1121 = vld [vmem:[#allocation2 + $0x8] sm:$0xf]
        %v1122 = vld [vmem:[#allocation2 + $0xc] sm:$0xf]
        %v1123 = vld [vmem:[#allocation2 + $0x10] sm:$0xf]
        %v1124 = vld [vmem:[#allocation2 + $0x14] sm:$0xf]
        %v1125 = vld [vmem:[#allocation2 + $0x18] sm:$0xf]
        %v1126 = vld [vmem:[#allocation2 + $0x1c] sm:$0xf]
        %v1143 = vunpack.c.l.b16 %v1103
        %v1144 = vunpack.c.l.b16 %v1104
        %v1145 = vunpack.c.l.b16 %v1105
        %v1146 = vunpack.c.l.b16 %v1106
        %v1147 = vunpack.c.l.b16 %v1107
        %v1148 = vunpack.c.l.b16 %v1108
        %v1149 = vunpack.c.l.b16 %v1109
        %v1150 = vunpack.c.l.b16 %v1110
        %v1151 = vunpack.c.l.b16 %v1111
        %v1152 = vunpack.c.l.b16 %v1112
        %v1153 = vunpack.c.l.b16 %v1113
        %v1154 = vunpack.c.l.b16 %v1114
        %v1155 = vunpack.c.l.b16 %v1115
        %v1156 = vunpack.c.l.b16 %v1116
        %v1157 = vunpack.c.l.b16 %v1117
        %v1158 = vunpack.c.l.b16 %v1118
        %v1159 = vpack.c.b16 %v1144, %v1143
        %v1160 = vpack.c.b16 %v1146, %v1145
        %v1161 = vpack.c.b16 %v1148, %v1147
        %v1162 = vpack.c.b16 %v1150, %v1149
        %v1163 = vpack.c.b16 %v1152, %v1151
        %v1164 = vpack.c.b16 %v1154, %v1153
        %v1165 = vpack.c.b16 %v1156, %v1155
        %v1166 = vpack.c.b16 %v1158, %v1157
        %v1175 = vunpack.c.l.b16 %v1119
        %v1176 = vunpack.c.l.b16 %v1120
        %v1177 = vunpack.c.l.b16 %v1121
        %v1178 = vunpack.c.l.b16 %v1122
        %v1179 = vunpack.c.l.b16 %v1123
        %v1180 = vunpack.c.l.b16 %v1124
        %v1181 = vunpack.c.l.b16 %v1125
        %v1182 = vunpack.c.l.b16 %v1126
        %v1183 = vpack.c.b16 %v1176, %v1175
        %v1184 = vpack.c.b16 %v1178, %v1177
        %v1185 = vpack.c.b16 %v1180, %v1179
        %v1186 = vpack.c.b16 %v1182, %v1181
        %vm1191 = vcmask 523264
        %v1193 = vsel %vm1191, %v1159, 0
        %v1196 = vsel %vm1191, %v1160, 0
        %v1199 = vsel %vm1191, %v1161, 0
        %v1202 = vsel %vm1191, %v1162, 0
        %v1205 = vsel %vm1191, %v1163, 0
        %v1208 = vsel %vm1191, %v1164, 0
        %v1211 = vsel %vm1191, %v1165, 0
        %v1214 = vsel %vm1191, %v1166, 0
        %1216 = vmatprep.subr.bf16.mxu0 0
        %1217 = vmatpush1.bf16.msra.mxu0 0
        %1218 = vmatprep.subr.bf16.mxu0 0
        %1219 = vmatpush1.bf16.msra.mxu0 0
        %1220 = vmatprep.subr.bf16.mxu0 0
        %1221 = vmatpush1.bf16.msra.mxu0 0
        %1222 = vmatprep.subr.bf16.mxu0 0
        %1223 = vmatpush1.bf16.msra.mxu0 0
        %1224 = vmatprep.subr.bf16.mxu0 0
        %1225 = vmatpush1.bf16.msra.mxu0 %v1186
        %1226 = vmatprep.subr.bf16.mxu0 0
        %1227 = vmatpush1.bf16.msra.mxu0 %v1185
        %1228 = vmatprep.subr.bf16.mxu0 0
        %1229 = vmatpush1.bf16.msra.mxu0 %v1184
        %1230 = vmatprep.subr.bf16.mxu0 0
        %1231 = vmatpush1.bf16.msra.mxu0 %v1183
        %1232 = vmatprep.subr.bf16.mxu0 0
        %1233 = vmatpush2.bf16.msra.mxu0 0
        %1234 = vmatprep.subr.bf16.mxu0 0
        %1235 = vmatpush2.bf16.msra.mxu0 0
        %1236 = vmatprep.subr.bf16.mxu0 0
        %1237 = vmatpush2.bf16.msra.mxu0 0
        %1238 = vmatprep.subr.bf16.mxu0 0
        %1239 = vmatpush2.bf16.msra.mxu0 0
        %1240 = vmatprep.subr.bf16.mxu0 0
        %1241 = vmatpush2.bf16.msra.mxu0 0
        %1242 = vmatprep.subr.bf16.mxu0 0
        %1243 = vmatpush2.bf16.msra.mxu0 0
        %1244 = vmatprep.subr.bf16.mxu0 0
        %1245 = vmatpush2.bf16.msra.mxu0 0
        %1246 = vmatprep.subr.bf16.mxu0 0
        %1247 = vmatpush2.bf16.msra.mxu0 0
        %1248 = vmatprep.mubr.bf16.mxu0 0
        %1249 = vmatmul.mubr.bf16.gmra.mxu0 %v1193
        %v1250 = vpop.f32.mrf.mxu0
        %v1251 = vadd.f32 0.0, %v1250
        %v1252 = vpop.f32.mrf.mxu0
        %v1253 = vpop.f32.mrf.mxu0
        %v1254 = vadd.f32 0.0, %v1253
        %v1255 = vpop.f32.mrf.mxu0
        %1256 = vmatprep.mubr.bf16.mxu0 0
        %1257 = vmatmul.mubr.bf16.gmra.mxu0 %v1196
        %v1258 = vpop.f32.mrf.mxu0
        %v1259 = vadd.f32 0.0, %v1258
        %v1260 = vpop.f32.mrf.mxu0
        %v1261 = vpop.f32.mrf.mxu0
        %v1262 = vadd.f32 0.0, %v1261
        %v1263 = vpop.f32.mrf.mxu0
        %1264 = vmatprep.mubr.bf16.mxu0 0
        %1265 = vmatmul.mubr.bf16.gmra.mxu0 %v1199
        %v1266 = vpop.f32.mrf.mxu0
        %v1267 = vadd.f32 0.0, %v1266
        %v1268 = vpop.f32.mrf.mxu0
        %v1269 = vpop.f32.mrf.mxu0
        %v1270 = vadd.f32 0.0, %v1269
        %v1271 = vpop.f32.mrf.mxu0
        %1272 = vmatprep.mubr.bf16.mxu0 0
        %1273 = vmatmul.mubr.bf16.gmra.mxu0 %v1202
        %v1274 = vpop.f32.mrf.mxu0
        %v1275 = vadd.f32 0.0, %v1274
        %v1276 = vpop.f32.mrf.mxu0
        %v1277 = vpop.f32.mrf.mxu0
        %v1278 = vadd.f32 0.0, %v1277
        %v1279 = vpop.f32.mrf.mxu0
        %1280 = vmatprep.mubr.bf16.mxu0 0
        %1281 = vmatmul.mubr.bf16.gmra.mxu0 %v1205
        %v1282 = vpop.f32.mrf.mxu0
        %v1283 = vadd.f32 0.0, %v1282
        %v1284 = vpop.f32.mrf.mxu0
        %v1285 = vpop.f32.mrf.mxu0
        %v1286 = vadd.f32 0.0, %v1285
        %v1287 = vpop.f32.mrf.mxu0
        %1288 = vmatprep.mubr.bf16.mxu0 0
        %1289 = vmatmul.mubr.bf16.gmra.mxu0 %v1208
        %v1290 = vpop.f32.mrf.mxu0
        %v1291 = vadd.f32 0.0, %v1290
        %v1292 = vpop.f32.mrf.mxu0
        %v1293 = vpop.f32.mrf.mxu0
        %v1294 = vadd.f32 0.0, %v1293
        %v1295 = vpop.f32.mrf.mxu0
        %1296 = vmatprep.mubr.bf16.mxu0 0
        %1297 = vmatmul.mubr.bf16.gmra.mxu0 %v1211
        %v1298 = vpop.f32.mrf.mxu0
        %v1299 = vadd.f32 0.0, %v1298
        %v1300 = vpop.f32.mrf.mxu0
        %v1301 = vpop.f32.mrf.mxu0
        %v1302 = vadd.f32 0.0, %v1301
        %v1303 = vpop.f32.mrf.mxu0
        %1304 = vmatprep.mubr.bf16.mxu0 0
        %1305 = vmatmul.mubr.bf16.gmra.mxu0 %v1214
        %v1306 = vpop.f32.mrf.mxu0
        %v1307 = vadd.f32 0.0, %v1306
        %v1308 = vpop.f32.mrf.mxu0
        %v1309 = vpop.f32.mrf.mxu0
        %v1310 = vadd.f32 0.0, %v1309
        %v1311 = vpop.f32.mrf.mxu0
        %1312 = vdwg.mxu0
        %v1329 = vunpack.c.l.b16 %v1087
        %v1330 = vunpack.c.l.b16 %v1088
        %v1331 = vunpack.c.l.b16 %v1089
        %v1332 = vunpack.c.l.b16 %v1090
        %v1333 = vunpack.c.l.b16 %v1091
        %v1334 = vunpack.c.l.b16 %v1092
        %v1335 = vunpack.c.l.b16 %v1093
        %v1336 = vunpack.c.l.b16 %v1094
        %v1337 = vunpack.c.l.b16 %v1095
        %v1338 = vunpack.c.l.b16 %v1096
        %v1339 = vunpack.c.l.b16 %v1097
        %v1340 = vunpack.c.l.b16 %v1098
        %v1341 = vunpack.c.l.b16 %v1099
        %v1342 = vunpack.c.l.b16 %v1100
        %v1343 = vunpack.c.l.b16 %v1101
        %v1344 = vunpack.c.l.b16 %v1102
        %v1345 = vpack.c.b16 %v1330, %v1329
        %v1346 = vpack.c.b16 %v1332, %v1331
        %v1347 = vpack.c.b16 %v1334, %v1333
        %v1348 = vpack.c.b16 %v1336, %v1335
        %v1349 = vpack.c.b16 %v1338, %v1337
        %v1350 = vpack.c.b16 %v1340, %v1339
        %v1351 = vpack.c.b16 %v1342, %v1341
        %v1352 = vpack.c.b16 %v1344, %v1343
        %1361 = vmatprep.subr.bf16.mxu0 0
        %1362 = vmatpush1.bf16.msra.mxu0 %v1352
        %1363 = vmatprep.subr.bf16.mxu0 0
        %1364 = vmatpush1.bf16.msra.mxu0 %v1351
        %1365 = vmatprep.subr.bf16.mxu0 0
        %1366 = vmatpush1.bf16.msra.mxu0 %v1350
        %1367 = vmatprep.subr.bf16.mxu0 0
        %1368 = vmatpush1.bf16.msra.mxu0 %v1349
        %1369 = vmatprep.subr.bf16.mxu0 0
        %1370 = vmatpush1.bf16.msra.mxu0 %v1348
        %1371 = vmatprep.subr.bf16.mxu0 0
        %1372 = vmatpush1.bf16.msra.mxu0 %v1347
        %1373 = vmatprep.subr.bf16.mxu0 0
        %1374 = vmatpush1.bf16.msra.mxu0 %v1346
        %1375 = vmatprep.subr.bf16.mxu0 0
        %1376 = vmatpush1.bf16.msra.mxu0 %v1345
        %1377 = vmatprep.subr.bf16.mxu0 0
        %1378 = vmatpush2.bf16.msra.mxu0 0
        %1379 = vmatprep.subr.bf16.mxu0 0
        %1380 = vmatpush2.bf16.msra.mxu0 0
        %1381 = vmatprep.subr.bf16.mxu0 0
        %1382 = vmatpush2.bf16.msra.mxu0 0
        %1383 = vmatprep.subr.bf16.mxu0 0
        %1384 = vmatpush2.bf16.msra.mxu0 0
        %1385 = vmatprep.subr.bf16.mxu0 0
        %1386 = vmatpush2.bf16.msra.mxu0 0
        %1387 = vmatprep.subr.bf16.mxu0 0
        %1388 = vmatpush2.bf16.msra.mxu0 0
        %1389 = vmatprep.subr.bf16.mxu0 0
        %1390 = vmatpush2.bf16.msra.mxu0 0
        %1391 = vmatprep.subr.bf16.mxu0 0
        %1392 = vmatpush2.bf16.msra.mxu0 0
        %1393 = vmatprep.mubr.bf16.mxu0 0
        %1394 = vmatmul.mubr.bf16.gmra.mxu0 %v1079
        %v1395 = vpop.f32.mrf.mxu0
        %v1396 = vadd.f32 %v1251, %v1395
        %v1397 = vpop.f32.mrf.mxu0
        %v1398 = vpop.f32.mrf.mxu0
        %v1399 = vadd.f32 %v1254, %v1398
        %v1400 = vpop.f32.mrf.mxu0
        %1401 = vmatprep.mubr.bf16.mxu0 0
        %1402 = vmatmul.mubr.bf16.gmra.mxu0 %v1080
        %v1403 = vpop.f32.mrf.mxu0
        %v1404 = vadd.f32 %v1259, %v1403
        %v1405 = vpop.f32.mrf.mxu0
        %v1406 = vpop.f32.mrf.mxu0
        %v1407 = vadd.f32 %v1262, %v1406
        %v1408 = vpop.f32.mrf.mxu0
        %1409 = vmatprep.mubr.bf16.mxu0 0
        %1410 = vmatmul.mubr.bf16.gmra.mxu0 %v1081
        %v1411 = vpop.f32.mrf.mxu0
        %v1412 = vadd.f32 %v1267, %v1411
        %v1413 = vpop.f32.mrf.mxu0
        %v1414 = vpop.f32.mrf.mxu0
        %v1415 = vadd.f32 %v1270, %v1414
        %v1416 = vpop.f32.mrf.mxu0
        %1417 = vmatprep.mubr.bf16.mxu0 0
        %1418 = vmatmul.mubr.bf16.gmra.mxu0 %v1082
        %v1419 = vpop.f32.mrf.mxu0
        %v1420 = vadd.f32 %v1275, %v1419
        %v1421 = vpop.f32.mrf.mxu0
        %v1422 = vpop.f32.mrf.mxu0
        %v1423 = vadd.f32 %v1278, %v1422
        %v1424 = vpop.f32.mrf.mxu0
        %1425 = vmatprep.mubr.bf16.mxu0 0
        %1426 = vmatmul.mubr.bf16.gmra.mxu0 %v1083
        %v1427 = vpop.f32.mrf.mxu0
        %v1428 = vadd.f32 %v1283, %v1427
        %v1429 = vpop.f32.mrf.mxu0
        %v1430 = vpop.f32.mrf.mxu0
        %v1431 = vadd.f32 %v1286, %v1430
        %v1432 = vpop.f32.mrf.mxu0
        %1433 = vmatprep.mubr.bf16.mxu0 0
        %1434 = vmatmul.mubr.bf16.gmra.mxu0 %v1084
        %v1435 = vpop.f32.mrf.mxu0
        %v1436 = vadd.f32 %v1291, %v1435
        %v1437 = vpop.f32.mrf.mxu0
        %v1438 = vpop.f32.mrf.mxu0
        %v1439 = vadd.f32 %v1294, %v1438
        %v1440 = vpop.f32.mrf.mxu0
        %1441 = vmatprep.mubr.bf16.mxu0 0
        %1442 = vmatmul.mubr.bf16.gmra.mxu0 %v1085
        %v1443 = vpop.f32.mrf.mxu0
        %v1444 = vadd.f32 %v1299, %v1443
        %v1445 = vpop.f32.mrf.mxu0
        %v1446 = vpop.f32.mrf.mxu0
        %v1447 = vadd.f32 %v1302, %v1446
        %v1448 = vpop.f32.mrf.mxu0
        %1449 = vmatprep.mubr.bf16.mxu0 0
        %1450 = vmatmul.mubr.bf16.gmra.mxu0 %v1086
        %v1451 = vpop.f32.mrf.mxu0
        %v1452 = vadd.f32 %v1307, %v1451
        %v1453 = vpop.f32.mrf.mxu0
        %v1454 = vpop.f32.mrf.mxu0
        %v1455 = vadd.f32 %v1310, %v1454
        %v1456 = vpop.f32.mrf.mxu0
        %1457 = vdwg.mxu0
        %v1458 = vld [vmem:[%s7] sm:$0x1]
        %v1460 = vlaneseq
        %v1461 = vshrl.u32 %v1460, 7
        %v1462 = vsub.s32 0, %v1461
        %v1463 = vrot.slane %v1458, %v1462
        %v1465 = vadd.f32 %v1396, %v1463
        %v1466 = vadd.f32 %v1399, %v1463
        %v1467 = vadd.f32 %v1404, %v1463
        %v1468 = vadd.f32 %v1407, %v1463
        %v1469 = vadd.f32 %v1412, %v1463
        %v1470 = vadd.f32 %v1415, %v1463
        %v1471 = vadd.f32 %v1420, %v1463
        %v1472 = vadd.f32 %v1423, %v1463
        %v1473 = vadd.f32 %v1428, %v1463
        %v1474 = vadd.f32 %v1431, %v1463
        %v1475 = vadd.f32 %v1436, %v1463
        %v1476 = vadd.f32 %v1439, %v1463
        %v1477 = vadd.f32 %v1444, %v1463
        %v1478 = vadd.f32 %v1447, %v1463
        %v1479 = vadd.f32 %v1452, %v1463
        %v1480 = vadd.f32 %v1455, %v1463
        %v1481 = vmax.f32 %v1465, 0.0
        %v1482 = vmax.f32 %v1466, 0.0
        %v1483 = vmax.f32 %v1467, 0.0
        %v1484 = vmax.f32 %v1468, 0.0
        %v1485 = vmax.f32 %v1469, 0.0
        %v1486 = vmax.f32 %v1470, 0.0
        %v1487 = vmax.f32 %v1471, 0.0
        %v1488 = vmax.f32 %v1472, 0.0
        %v1489 = vmax.f32 %v1473, 0.0
        %v1490 = vmax.f32 %v1474, 0.0
        %v1491 = vmax.f32 %v1475, 0.0
        %v1492 = vmax.f32 %v1476, 0.0
        %v1493 = vmax.f32 %v1477, 0.0
        %v1494 = vmax.f32 %v1478, 0.0
        %v1495 = vmax.f32 %v1479, 0.0
        %v1496 = vmax.f32 %v1480, 0.0
        %v1497 = vpack.c.bf16 %v1482, %v1481
        %v1498 = vpack.c.bf16 %v1484, %v1483
        %v1499 = vpack.c.bf16 %v1486, %v1485
        %v1500 = vpack.c.bf16 %v1488, %v1487
        %v1501 = vpack.c.bf16 %v1490, %v1489
        %v1502 = vpack.c.bf16 %v1492, %v1491
        %v1503 = vpack.c.bf16 %v1494, %v1493
        %v1504 = vpack.c.bf16 %v1496, %v1495
        %v1513 = vunpack.c.l.b16 %v1497
        %v1514 = vunpack.c.h.b16 %v1497
        %v1515 = vunpack.c.l.b16 %v1498
        %v1516 = vunpack.c.h.b16 %v1498
        %v1517 = vunpack.c.l.b16 %v1499
        %v1518 = vunpack.c.h.b16 %v1499
        %v1519 = vunpack.c.l.b16 %v1500
        %v1520 = vunpack.c.h.b16 %v1500
        %v1521 = vunpack.c.l.b16 %v1501
        %v1522 = vunpack.c.h.b16 %v1501
        %v1523 = vunpack.c.l.b16 %v1502
        %v1524 = vunpack.c.h.b16 %v1502
        %v1525 = vunpack.c.l.b16 %v1503
        %v1526 = vunpack.c.h.b16 %v1503
        %v1527 = vunpack.c.l.b16 %v1504
        %v1528 = vunpack.c.h.b16 %v1504
        %v1529 = vpack.c.b16 %v1513, %v1513
        %v1530 = vpack.c.b16 %v1514, %v1514
        %v1531 = vpack.c.b16 %v1515, %v1515
        %v1532 = vpack.c.b16 %v1516, %v1516
        %v1533 = vpack.c.b16 %v1517, %v1517
        %v1534 = vpack.c.b16 %v1518, %v1518
        %v1535 = vpack.c.b16 %v1519, %v1519
        %v1536 = vpack.c.b16 %v1520, %v1520
        %v1537 = vpack.c.b16 %v1521, %v1521
        %v1538 = vpack.c.b16 %v1522, %v1522
        %v1539 = vpack.c.b16 %v1523, %v1523
        %v1540 = vpack.c.b16 %v1524, %v1524
        %v1541 = vpack.c.b16 %v1525, %v1525
        %v1542 = vpack.c.b16 %v1526, %v1526
        %v1543 = vpack.c.b16 %v1527, %v1527
        %v1544 = vpack.c.b16 %v1528, %v1528
        %1561 = vst [vmem:[%s395] sm:$0xf] %v1529
        %1562 = vst [vmem:[%s395 + $0x4] sm:$0xf] %v1530
        %1563 = vst [vmem:[%s395 + $0x8] sm:$0xf] %v1531
        %1564 = vst [vmem:[%s395 + $0xc] sm:$0xf] %v1532
        %1565 = vst [vmem:[%s395 + $0x10] sm:$0xf] %v1533
        %1566 = vst [vmem:[%s395 + $0x14] sm:$0xf] %v1534
        %1567 = vst [vmem:[%s395 + $0x18] sm:$0xf] %v1535
        %1568 = vst [vmem:[%s395 + $0x1c] sm:$0xf] %v1536
        %1569 = vst [vmem:[%s395 + $0x20] sm:$0xf] %v1537
        %1570 = vst [vmem:[%s395 + $0x24] sm:$0xf] %v1538
        %1571 = vst [vmem:[%s395 + $0x28] sm:$0xf] %v1539
        %1572 = vst [vmem:[%s395 + $0x2c] sm:$0xf] %v1540
        %1573 = vst [vmem:[%s395 + $0x30] sm:$0xf] %v1541
        %1574 = vst [vmem:[%s395 + $0x34] sm:$0xf] %v1542
        %1575 = vst [vmem:[%s395 + $0x38] sm:$0xf] %v1543
        %1576 = vst [vmem:[%s395 + $0x3c] sm:$0xf] %v1544
        %s1577 = sand.u32 %s248, 1
        %s1578 = scalar_lea.sflag [#allocation5], %s1577
        %s1579 = sand.u32 %s248, 1
        %s1580 = smul.addr %s1579, 64
        %s1581 = scalar_lea.vmem [#allocation8], %s1580
        // Predicated region
        $region69: #{tpu_custom_call.1} parent=55 // pred_check
          %p1582 = pneg %p258
        $region70: #{tpu_custom_call.1} parent=55 // pred_check_branch
          %1584 = sbr.rel (%p1582) target = $region72
        $region71: #{tpu_custom_call.1} parent=55 // pred_region
          %s1585 = smul.u32 16, %s32
          %s1587 = ssub.s32 1024, 1024
          %1588 = vsyncadd %s1578, %s1587
          %s1589 = smul.addr %s31, 32
          %s1590 = sadd.s32 %s1585, %s1589
          %s1591 = smul.addr %s1590, 64
          %s1592 = scalar_lea.hbm %s9, %s1591
          %s1593 = sshll.u32 %s1581, 4
          %s1594 = int_to_ptr.vmem [resolvable:$true] %s1593
          %1599 = dma.vmem_to_hbm [thread:$0]  %s1594, 1024, %s1592, %s1578, 64, 64, 4
        $region72: #{tpu_custom_call.1} parent=55 // pred_fallthru
          _
      $region56: #{tpu_custom_call.1} parent=5 // pred_fallthru
        _
      %p1600 = scmp.le.s32.totalorder 2, %s22
      // Predicated region
      $region73: #{tpu_custom_call.1} parent=5 // pred_check
        %p1601 = pneg %p1600
      $region74: #{tpu_custom_call.1} parent=5 // pred_check_branch
        %1603 = sbr.rel (%p1601) target = $region76
      $region75: #{tpu_custom_call.1} parent=5 // pred_region
        %s1604 = ssub.s32 %s22, 2
        // Predicated region
        $region77: #{tpu_custom_call.1} parent=75 // pred_check
          %p1605 = pneg %p264
        $region78: #{tpu_custom_call.1} parent=75 // pred_check_branch
          %1607 = sbr.rel (%p1605) target = $region80
        $region79: #{tpu_custom_call.1} parent=75 // pred_region
          %s1608 = sand.u32 %s249, 1
          %s1609 = scalar_lea.sflag [#allocation5], %s1608
          %s1610 = sand.u32 %s249, 1
          %s1611 = smul.addr %s1610, 64
          %s1612 = scalar_lea.vmem [#allocation8], %s1611
          %1613 = dma.done %s1609, 1024
        $region80: #{tpu_custom_call.1} parent=75 // pred_fallthru
          _
      $region76: #{tpu_custom_call.1} parent=5 // pred_fallthru
        _
    $region6: #{tpu_custom_call.1} parent=1 // loop_footer
      %s26 = sadd.s32 1, %s22
    $region7: #{tpu_custom_call.1} parent=1 // loop_footer_branch
      %21 = sbr.rel target = $region3
    $region8: #{tpu_custom_call.1} parent=1 // loop_exit
      _
    %1614 = vsyncpa [#allocation4], 1
    %s1615 = scalar_lea.sflag [#allocation4], 1
    %1616 = vsyncpa %s1615, 1
    %1617 = vsyncpa [#allocation7], 1
    %1618 = vsyncpa [#allocation5], 1
    %s1619 = scalar_lea.sflag [#allocation5], 1
    %1620 = vsyncpa %s1619, 1

</llo_original>
